<compile_context>
chip_gen: v7x
topology: tpu7x:2x2x1
jax: 0.10.0
libtpu: 0.0.40
codegen_flags: <defaults>
</compile_context>

<pallas_src>
import math
import functools

import numpy as np
import jax
import jax.numpy as jnp
from jax import lax
from jax.experimental import pallas as pl
from jax.experimental.pallas import tpu as pltpu

_EPS_F32 = 1.1920928955078125e-07          # torch.finfo(torch.float32).eps


def _round_up(x, m):
    return ((x + m - 1) // m) * m


@functools.lru_cache(maxsize=None)
def _vmem_limit_bytes():
    """Generation-aware VMEM limit: ~3/4 of physical, capped at 112 MiB."""
    cap = 64 * 1024 * 1024
    try:
        info = pltpu.get_tpu_info()
        cap = int(getattr(info, "vmem_capacity_bytes", cap))
    except Exception:
        pass
    return min((cap * 3) // 4, 112 * 1024 * 1024)


# ----------------------------------------------------------------------------
# julius.SplitBands filter construction (compile-time constants)
# ----------------------------------------------------------------------------
def _hz_to_mel(f):
    return 2595.0 * math.log10(1.0 + f / 700.0)


def _mel_to_hz(m):
    return 700.0 * (10.0 ** (m / 2595.0) - 1.0)


def _mel_frequencies(n_mels, fmin, fmax):
    low, high = _hz_to_mel(fmin), _hz_to_mel(fmax)
    return [_mel_to_hz(low + (high - low) * i / (n_mels - 1)) for i in range(n_mels)]


def make_lowpass_filters(sample_rate, n_bands, zeros=8):
    """Windowed-sinc lowpass filter bank, matching julius.LowPassFilters."""
    cutoffs_hz = _mel_frequencies(n_bands + 1, 0.0, sample_rate / 2.0)[1:-1]
    cutoffs = [c / sample_rate for c in cutoffs_hz]          # normalized
    half_size = int(zeros / min(cutoffs) / 2)
    n = 2 * half_size + 1
    filters = []
    for c in cutoffs:
        taps = []
        for i in range(n):
            t = i - half_size
            w = 0.5 * (1.0 - math.cos(2.0 * math.pi * i / (n - 1)))   # hann, periodic=False
            x = 2.0 * math.pi * c * t
            s = 1.0 if x == 0.0 else math.sin(x) / x                   # julius sinc
            taps.append(2.0 * c * w * s)
        ssum = sum(taps)
        filters.append([v / ssum for v in taps])                       # sum-normalized
    return filters, half_size


# ----------------------------------------------------------------------------
# Pallas kernel 1: band-split FIR as block-Toeplitz MXU matmul
#   (band differencing folded into the filter constants; time tiles stacked on
#    the matmul M dimension; single lane-dense output store)
# ----------------------------------------------------------------------------
def _fir_kernel(x_ref, m_ref, o_ref):
    o_ref[...] = jnp.dot(x_ref[...], m_ref[...], preferred_element_type=jnp.float32)


def split_bands_pallas(x_rows, filters, half_size, n_bands, t_tile=256):
    """x_rows (R, T) -> bands (n_bands, R, T), matching julius.SplitBands."""
    R, T = x_rows.shape
    ksize = 2 * half_size + 1
    n_cut = n_bands - 1

    # band-difference filters baked as constants
    f = np.asarray(filters, np.float64)                      # (n_cut, ksize)
    bf = np.zeros((n_bands, ksize), np.float64)
    bf[0] = f[0]
    for i in range(1, n_cut):
        bf[i] = f[i] - f[i - 1]
    delta = np.zeros(ksize, np.float64)
    delta[half_size] = 1.0
    bf[n_bands - 1] = delta - f[n_cut - 1]

    w = _round_up(t_tile + ksize - 1, 128)
    n_out = n_bands * t_tile                                  # lane-dense, multiple of 128
    m = np.zeros((w, n_out), np.float32)
    for b in range(n_bands):
        for j in range(t_tile):
            m[j:j + ksize, b * t_tile + j] = bf[b]
    # TODO(synk): for large n_bands the (w, n_bands*t_tile) Toeplitz should be
    #             tiled over bands instead of kept fully resident.

    n_t = -(-T // t_tile)
    lpad = (n_t - 1) * t_tile + w
    xp = jnp.pad(x_rows.astype(jnp.float32), ((0, 0), (half_size, half_size)), mode="edge")
    xp = jnp.pad(xp, ((0, 0), (0, lpad - xp.shape[1])))

    # im2col: stack all (overlapping) time-tile windows on the matmul M dim.
    starts = np.arange(n_t) * t_tile
    idx = starts[:, None] + np.arange(w)[None, :]             # (n_t, w)
    xw = xp[:, jnp.asarray(idx)].reshape(R * n_t, w)          # (R*n_t, w)

    M = R * n_t
    m_tile = 256 if M > 256 else _round_up(M, 8)
    m_pad = _round_up(M, m_tile)
    xw = jnp.pad(xw, ((0, m_pad - M), (0, 0)))

    out = pl.pallas_call(
        _fir_kernel,
        out_shape=jax.ShapeDtypeStruct((m_pad, n_out), jnp.float32),
        grid=(m_pad // m_tile,),
        in_specs=[
            pl.BlockSpec((m_tile, w), lambda i: (i, 0)),
            pl.BlockSpec((w, n_out), lambda i: (0, 0)),       # invariant Toeplitz
        ],
        out_specs=pl.BlockSpec((m_tile, n_out), lambda i: (i, 0)),
        compiler_params=pltpu.CompilerParams(
            dimension_semantics=("parallel",),
            vmem_limit_bytes=_vmem_limit_bytes()),
    )(xw, jnp.asarray(m))

    bands = out[:M].reshape(R, n_t, n_bands, t_tile)
    bands = jnp.transpose(bands, (2, 0, 1, 3)).reshape(n_bands, R, n_t * t_tile)
    return bands[:, :, :T]


# ----------------------------------------------------------------------------
# biquad coefficients (torchaudio treble_biquad / highpass_biquad), normalized
# ----------------------------------------------------------------------------
def _treble_coeffs(sr, gain, central_freq, Q):
    w0 = 2.0 * math.pi * central_freq / sr
    alpha = math.sin(w0) / 2.0 / Q
    A = math.exp(gain / 40.0 * math.log(10.0))
    t1 = 2.0 * math.sqrt(A) * alpha
    t2 = (A - 1.0) * math.cos(w0)
    t3 = (A + 1.0) * math.cos(w0)
    b0 = A * (A + 1.0 + t2 + t1)
    b1 = -2.0 * A * (A - 1.0 + t3)
    b2 = A * (A + 1.0 + t2 - t1)
    a0 = A + 1.0 - t2 + t1
    a1 = 2.0 * (A - 1.0 - t3)
    a2 = A + 1.0 - t2 - t1
    return (b0 / a0, b1 / a0, b2 / a0, a1 / a0, a2 / a0)


def _highpass_coeffs(sr, cutoff, Q):
    w0 = 2.0 * math.pi * cutoff / sr
    alpha = math.sin(w0) / 2.0 / Q
    b0 = (1.0 + math.cos(w0)) / 2.0
    b1 = -1.0 - math.cos(w0)
    b2 = b0
    a0 = 1.0 + alpha
    a1 = -2.0 * math.cos(w0)
    a2 = 1.0 - alpha
    return (b0 / a0, b1 / a0, b2 / a0, a1 / a0, a2 / a0)


# ----------------------------------------------------------------------------
# Pallas kernel 2: fused biquad cascade + gated loudness
#   frames packed onto full (8, 128) vregs; time loop unrolled by U;
#   gated energies accumulated in the loop carry (no scratch, no stores)
# ----------------------------------------------------------------------------
def _make_bql_kernel(c1, c2, n_super, U, f_gate, step, gate_samples):
    b10, b11, b12, a11, a12 = (float(v) for v in c1)
    b20, b21, b22, a21, a22 = (float(v) for v in c2)
    log10_scale = 10.0 / math.log(10.0)
    inv_gate = 1.0 / float(gate_samples)
    # gate-window bounds in 8-sample "superstep" units (exact: step % U == gate % U == 0)
    win_lo = [(g * step) // U for g in range(f_gate)]
    win_hi = [(g * step + gate_samples) // U for g in range(f_gate)]

    def kernel(x_ref, o_ref):
        # x_ref: (frame_pad, 8, 128)  time on the major axis, 1024 frames per vreg
        # o_ref: (f_gate, 8, 128)     loudness per gate window per frame
        z = jnp.zeros((8, 128), jnp.float32)
        init = (z,) * 8 + (z,) * f_gate
        # carry: x[-1], x[-2], y1[-1], y1[-2], clamp(y1)[-1], clamp(y1)[-2],
        #        y2[-1], y2[-2], energy accumulators (one per gate window)

        def super_body(c, carry):
            x_m1, x_m2, y1_m1, y1_m2, x2_m1, x2_m2, y2_m1, y2_m2 = carry[:8]
            accs = list(carry[8:])
            base = pl.multiple_of(c * U, U)
            xs = x_ref[pl.ds(base, U)]                       # one (U, 8, 128) slab load
            local = None
            for u in range(U):                               # manual unroll
                xn = xs[u]
                # treble biquad — torchaudio lfilter: feedback uses unclamped y1
                y1 = (b10 * xn + b11 * x_m1 + b12 * x_m2
                      - a11 * y1_m1 - a12 * y1_m2)
                x2 = jnp.clip(y1, -1.0, 1.0)                 # clamped output feeds stage 2
                # highpass biquad — feedback uses unclamped y2
                y2 = (b20 * x2 + b21 * x2_m1 + b22 * x2_m2
                      - a21 * y2_m1 - a22 * y2_m2)
                y2c = jnp.clip(y2, -1.0, 1.0)
                sq = y2c * y2c
                local = sq if local is None else local + sq
                x_m2, x_m1 = x_m1, xn
                y1_m2, y1_m1 = y1_m1, y1
                x2_m2, x2_m1 = x2_m1, x2
                y2_m2, y2_m1 = y2_m1, y2
            for g in range(f_gate):
                in_g = jnp.logical_and(c >= win_lo[g], c < win_hi[g])
                accs[g] = accs[g] + jnp.where(in_g, local, 0.0)
            return (x_m1, x_m2, y1_m1, y1_m2, x2_m1, x2_m2, y2_m1, y2_m2) + tuple(accs)

        final = lax.fori_loop(0, n_super, super_body, init)
        for g in range(f_gate):
            energy = final[8 + g] * inv_gate
            o_ref[g] = -0.691 + log10_scale * jnp.log(energy + _EPS_F32)

    return kernel


def loudness_packed(x_cols, sample_rate):
    """x_cols (frame, ncols) frames-as-columns -> loudness (f_gate, ncols)."""
    frame, ncols = x_cols.shape
    gate_samples = int(round(0.4 * sample_rate))
    step = int(round(gate_samples * (1.0 - 0.75)))
    assert frame >= gate_samples
    f_gate = (frame - gate_samples) // step + 1

    # unroll factor: must divide both the gate length and the gate step so that
    # every gate window is a whole number of supersteps
    U = 1
    for cand in (8, 4, 2):
        if step % cand == 0 and gate_samples % cand == 0:
            U = cand
            break

    frame_pad = _round_up(frame, U)          # trailing zeros land outside every window
    n_super = frame_pad // U
    COLS = 8 * 128                           # frames per block (full vreg occupancy)
    cols_pad = _round_up(max(ncols, 1), COLS)
    G = cols_pad // COLS

    xp = jnp.pad(x_cols.astype(jnp.float32),
                 ((0, frame_pad - frame), (0, cols_pad - ncols)))
    x_packed = xp.reshape(frame_pad, G, 8, 128)
    x_packed = jnp.transpose(x_packed, (1, 0, 2, 3)).reshape(G * frame_pad, 8, 128)

    c1 = _treble_coeffs(sample_rate, 4.0, 1500.0, 1.0 / math.sqrt(2.0))
    c2 = _highpass_coeffs(sample_rate, 38.0, 0.5)

    out = pl.pallas_call(
        _make_bql_kernel(c1, c2, n_super, U, f_gate, step, gate_samples),
        out_shape=jax.ShapeDtypeStruct((G * f_gate, 8, 128), jnp.float32),
        grid=(G,),
        in_specs=[pl.BlockSpec((frame_pad, 8, 128), lambda g: (g, 0, 0))],
        out_specs=pl.BlockSpec((f_gate, 8, 128), lambda g: (g, 0, 0)),
        compiler_params=pltpu.CompilerParams(
            dimension_semantics=("parallel",),
            vmem_limit_bytes=_vmem_limit_bytes()),
    )(x_packed)

    loud = out.reshape(G, f_gate, 8, 128)
    loud = jnp.transpose(loud, (1, 0, 2, 3)).reshape(f_gate, G * COLS)
    return loud[:, :ncols]


# ----------------------------------------------------------------------------
# Glue: unfold (slice-based, no gather) + full forward (TFLoudnessRatio.forward)
# ----------------------------------------------------------------------------
def _unfold_frames(a, frame, stride):
    """a (S, T) -> (S, F, frame), F = ceil(T / stride), zero-padded (torch _unfold)."""
    S, T = a.shape
    n_frames = math.ceil(T / stride)
    tgt = (n_frames - 1) * stride + frame
    a = jnp.pad(a, ((0, 0), (0, tgt - T)))
    if frame % stride == 0:
        ratio = frame // stride
        chunks = a.reshape(S, tgt // stride, stride)
        parts = [chunks[:, i:i + n_frames, :] for i in range(ratio)]
        return jnp.concatenate(parts, axis=-1)
    # TODO(synk): non-integer frame/stride ratio falls back to a plain-JAX gather.
    idx = jnp.arange(n_frames)[:, None] * stride + jnp.arange(frame)[None, :]
    return a[:, idx]


def _to_cols(frames):
    """(S, F, frame) -> (frame, S*F), columns ordered (s major, f minor)."""
    S, F, fr = frames.shape
    return jnp.transpose(frames, (2, 0, 1)).reshape(fr, S * F)


def tf_loudness_ratio(out_sig, ref_sig, *, sample_rate, segment, overlap,
                      n_bands, temperature):
    B, C, T = ref_sig.shape
    assert ref_sig.shape == out_sig.shape
    assert C == 1
    assert n_bands >= 2

    filters, half_size = make_lowpass_filters(sample_rate, n_bands)

    # band-split both signals in one pallas_call (out rows then ref rows)
    x_rows = jnp.concatenate([out_sig[:, 0, :], ref_sig[:, 0, :]], axis=0).astype(jnp.float32)
    bands = split_bands_pallas(x_rows, filters, half_size, n_bands)      # (n_bands, 2B, T)
    bands_out = bands[:, :B].reshape(n_bands * B, T)                     # band-major rows (torch order)
    bands_ref = bands[:, B:].reshape(n_bands * B, T)
    noise_rows = bands_out - bands_ref                                   # est - gt (unfold is linear)
    gt_rows = bands_ref

    frame = int(segment * sample_rate)
    stride = int(frame * (1 - overlap))
    noise_fr = _unfold_frames(noise_rows, frame, stride)                 # (S, F, frame)
    gt_fr = _unfold_frames(gt_rows, frame, stride)
    S, F, _ = gt_fr.shape
    N = S * F
    x_cols = jnp.concatenate([_to_cols(noise_fr), _to_cols(gt_fr)], axis=1)  # (frame, 2N)

    loud = loudness_packed(x_cols, sample_rate)                          # (f_gate, 2N)
    l_noise = loud[:, :N]
    l_ref = loud[:, N:2 * N]
    l_diff = (l_noise - l_ref).T                                         # (N, f_gate), torch row order
    l_ratio = l_diff.reshape(-1, B)                                      # matches torch .view(-1, B)

    # softmax-weighted mean in plain jnp (tiny operand; a pallas_call here is pure overhead)
    p = jax.nn.softmax(l_ratio / temperature, axis=0)
    return jnp.mean(p * l_ratio)


if __name__ == "__main__":
    key = jax.random.PRNGKey(0)
    k1, k2 = jax.random.split(key)
    B, C, T = 2, 1, 4000
    sample_rate = 4000   # keeps the 1500 Hz treble shelf below Nyquist -> stable biquads
    ref_sig = 0.5 * jax.random.normal(k1, (B, C, T), dtype=jnp.float32)
    out_sig = ref_sig + 0.1 * jax.random.normal(k2, (B, C, T), dtype=jnp.float32)

    fwd = jax.jit(functools.partial(
        tf_loudness_ratio,
        sample_rate=sample_rate, segment=0.5, overlap=0.5,
        n_bands=2, temperature=1.0))

    loss = fwd(out_sig, ref_sig)
    jax.block_until_ready(loss)
    assert loss.shape == ()
    assert bool(jnp.isfinite(loss))
    print("KERNEL_OK")
</pallas_src>

<mosaic_0001>
module attributes {stable_mosaic.version = 11 : i64} {
  func.func private @main(%arg0: i32) attributes {dimension_semantics = [#tpu.dimension_semantics<core_parallel>], iteration_bounds = array<i64: 2>, tpu.core_type = #tpu.core_type<sc_scalar_subcore>, window_params = []} {
    return
  }
}

module attributes {stable_mosaic.version = 11 : i64} {
  func.func private @main(%arg0: i32) attributes {dimension_semantics = [#tpu.dimension_semantics<core_parallel>], iteration_bounds = array<i64: 2>, tpu.core_type = #tpu.core_type<sc_scalar_subcore>, window_params = []} {
    return
  }
}

module attributes {stable_mosaic.version = 11 : i64} {
  func.func @_fir_kernel(%arg0: i32, %arg1: memref<64x384xf32, #tpu.memory_space<vmem>>, %arg2: memref<384x512xf32, #tpu.memory_space<vmem>>, %arg3: memref<64x512xf32, #tpu.memory_space<vmem>>) attributes {dimension_semantics = [#tpu.dimension_semantics<parallel>], iteration_bounds = array<i64: 1>, scalar_prefetch = 0 : i64, scratch_operands = 0 : i64, tpu.core_type = #tpu.core_type<tc>, window_params = [{transform_indices = @transform_0, window_bounds = array<i64: 64, 384>}, {pipeline_mode = #tpu.pipeline_mode<synchronous>, transform_indices = @transform_1, window_bounds = array<i64: 384, 512>}, {transform_indices = @transform_2, window_bounds = array<i64: 64, 512>}]} {
    %c0 = arith.constant 0 : index
    %c0_0 = arith.constant 0 : index
    %0 = vector.load %arg1[%c0, %c0_0] : memref<64x384xf32, #tpu.memory_space<vmem>>, vector<64x384xf32>
    %c0_1 = arith.constant 0 : index
    %c0_2 = arith.constant 0 : index
    %1 = vector.load %arg2[%c0_1, %c0_2] : memref<384x512xf32, #tpu.memory_space<vmem>>, vector<384x512xf32>
    %cst = arith.constant dense<0.000000e+00> : vector<64x512xf32>
    %2 = tpu.matmul %0, %1, %cst {dimension_numbers = #tpu.dot_dimension_numbers<[1], [0], [0], [1], [0, 0, 1, 1], [], []>} : vector<64x384xf32>, vector<384x512xf32>, vector<64x512xf32> -> vector<64x512xf32>
    %c0_3 = arith.constant 0 : index
    %c0_4 = arith.constant 0 : index
    %3 = vector.load %arg3[%c0_3, %c0_4] : memref<64x512xf32, #tpu.memory_space<vmem>>, vector<64x512xf32>
    tpu.vector_store %arg3[%c0_3, %c0_4], %2 {strides = array<i32>} : memref<64x512xf32, #tpu.memory_space<vmem>>, vector<64x512xf32>,
    return
  }
  func.func @transform_0(%arg0: i32) -> (i32, i32) {
    %c0_i32 = arith.constant 0 : i32
    %c0_i32_0 = arith.constant 0 : i32
    return %arg0, %c0_i32 : i32, i32
  }
  func.func @transform_1(%arg0: i32) -> (i32, i32) {
    %c0_i32 = arith.constant 0 : i32
    %c0_i32_0 = arith.constant 0 : i32
    %c0_i32_1 = arith.constant 0 : i32
    return %c0_i32, %c0_i32_0 : i32, i32
  }
  func.func @transform_2(%arg0: i32) -> (i32, i32) {
    %c0_i32 = arith.constant 0 : i32
    %c0_i32_0 = arith.constant 0 : i32
    return %arg0, %c0_i32 : i32, i32
  }
}

module attributes {stable_mosaic.version = 11 : i64} {
  func.func @kernel(%arg0: i32, %arg1: memref<2000x8x128xf32, #tpu.memory_space<vmem>>, %arg2: memref<2x8x128xf32, #tpu.memory_space<vmem>>) attributes {dimension_semantics = [#tpu.dimension_semantics<parallel>], iteration_bounds = array<i64: 1>, scalar_prefetch = 0 : i64, scratch_operands = 0 : i64, tpu.core_type = #tpu.core_type<tc>, window_params = [{transform_indices = @transform_0, window_bounds = array<i64: 2000, 8, 128>}, {transform_indices = @transform_1, window_bounds = array<i64: 2, 8, 128>}]} {
    %cst = arith.constant 0.000000e+00 : f32
    %0 = vector.broadcast %cst : f32 to vector<8x128xf32>
    %c0_i32 = arith.constant 0 : i32
    %c250_i32 = arith.constant 250 : i32
    %1 = arith.addi %c0_i32, %c250_i32 : i32
    %c1_i32 = arith.constant 1 : i32
    %2:10 = scf.for %arg3 = %c0_i32 to %1 step %c1_i32 iter_args(%arg4 = %0, %arg5 = %0, %arg6 = %0, %arg7 = %0, %arg8 = %0, %arg9 = %0, %arg10 = %0, %arg11 = %0, %arg12 = %0, %arg13 = %0) -> (vector<8x128xf32>, vector<8x128xf32>, vector<8x128xf32>, vector<8x128xf32>, vector<8x128xf32>, vector<8x128xf32>, vector<8x128xf32>, vector<8x128xf32>, vector<8x128xf32>, vector<8x128xf32>)  : i32 {
      %c8_i32 = arith.constant 8 : i32
      %27 = arith.muli %arg3, %c8_i32 : i32
      %28 = tpu.assume_multiple %27, 8 : i32
      %29 = arith.index_cast %28 : i32 to index
      %c0_13 = arith.constant 0 : index
      %c0_14 = arith.constant 0 : index
      %30 = vector.load %arg1[%29, %c0_13, %c0_14] : memref<2000x8x128xf32, #tpu.memory_space<vmem>>, vector<8x8x128xf32>
      %31 = vector.extract_strided_slice %30 {offsets = [0, 0, 0], sizes = [1, 8, 128], strides = [1, 1, 1]} : vector<8x8x128xf32> to vector<1x8x128xf32>
      %32 = vector.shape_cast %31 : vector<1x8x128xf32> to vector<8x128xf32>
      %cst_15 = arith.constant 1.12958086 : f32
      %33 = vector.broadcast %cst_15 : f32 to vector<8x128xf32>
      %34 = arith.mulf %33, %32 : vector<8x128xf32>
      %cst_16 = arith.constant 0.945510983 : f32
      %35 = vector.broadcast %cst_16 : f32 to vector<8x128xf32>
      %36 = arith.mulf %35, %arg4 : vector<8x128xf32>
      %37 = arith.addf %34, %36 : vector<8x128xf32>
      %cst_17 = arith.constant 0.336918175 : f32
      %38 = vector.broadcast %cst_17 : f32 to vector<8x128xf32>
      %39 = arith.mulf %38, %arg5 : vector<8x128xf32>
      %40 = arith.addf %37, %39 : vector<8x128xf32>
      %cst_18 = arith.constant 1.04164445 : f32
      %41 = vector.broadcast %cst_18 : f32 to vector<8x128xf32>
      %42 = arith.mulf %41, %arg6 : vector<8x128xf32>
      %43 = arith.subf %40, %42 : vector<8x128xf32>
      %cst_19 = arith.constant 0.37036562 : f32
      %44 = vector.broadcast %cst_19 : f32 to vector<8x128xf32>
      %45 = arith.mulf %44, %arg7 : vector<8x128xf32>
      %46 = arith.subf %43, %45 : vector<8x128xf32>
      %cst_20 = arith.constant -1.000000e+00 : f32
      %cst_21 = arith.constant 1.000000e+00 : f32
      %47 = vector.broadcast %cst_20 : f32 to vector<8x128xf32>
      %48 = arith.maximumf %47, %46 : vector<8x128xf32>
      %49 = vector.broadcast %cst_21 : f32 to vector<8x128xf32>
      %50 = arith.minimumf %49, %48 : vector<8x128xf32>
      %cst_22 = arith.constant 0.942863226 : f32
      %51 = vector.broadcast %cst_22 : f32 to vector<8x128xf32>
      %52 = arith.mulf %51, %50 : vector<8x128xf32>
      %cst_23 = arith.constant -1.88572645 : f32
      %53 = vector.broadcast %cst_23 : f32 to vector<8x128xf32>
      %54 = arith.mulf %53, %arg8 : vector<8x128xf32>
      %55 = arith.addf %52, %54 : vector<8x128xf32>
      %cst_24 = arith.constant 0.942863226 : f32
      %56 = vector.broadcast %cst_24 : f32 to vector<8x128xf32>
      %57 = arith.mulf %56, %arg9 : vector<8x128xf32>
      %58 = arith.addf %55, %57 : vector<8x128xf32>
      %cst_25 = arith.constant -1.88404572 : f32
      %59 = vector.broadcast %cst_25 : f32 to vector<8x128xf32>
      %60 = arith.mulf %59, %arg10 : vector<8x128xf32>
      %61 = arith.subf %58, %60 : vector<8x128xf32>
      %cst_26 = arith.constant 0.887407064 : f32
      %62 = vector.broadcast %cst_26 : f32 to vector<8x128xf32>
      %63 = arith.mulf %62, %arg11 : vector<8x128xf32>
      %64 = arith.subf %61, %63 : vector<8x128xf32>
      %cst_27 = arith.constant -1.000000e+00 : f32
      %cst_28 = arith.constant 1.000000e+00 : f32
      %65 = vector.broadcast %cst_27 : f32 to vector<8x128xf32>
      %66 = arith.maximumf %65, %64 : vector<8x128xf32>
      %67 = vector.broadcast %cst_28 : f32 to vector<8x128xf32>
      %68 = arith.minimumf %67, %66 : vector<8x128xf32>
      %69 = arith.mulf %68, %68 : vector<8x128xf32>
      %70 = vector.extract_strided_slice %30 {offsets = [1, 0, 0], sizes = [1, 8, 128], strides = [1, 1, 1]} : vector<8x8x128xf32> to vector<1x8x128xf32>
      %71 = vector.shape_cast %70 : vector<1x8x128xf32> to vector<8x128xf32>
      %cst_29 = arith.constant 1.12958086 : f32
      %72 = vector.broadcast %cst_29 : f32 to vector<8x128xf32>
      %73 = arith.mulf %72, %71 : vector<8x128xf32>
      %cst_30 = arith.constant 0.945510983 : f32
      %74 = vector.broadcast %cst_30 : f32 to vector<8x128xf32>
      %75 = arith.mulf %74, %32 : vector<8x128xf32>
      %76 = arith.addf %73, %75 : vector<8x128xf32>
      %cst_31 = arith.constant 0.336918175 : f32
      %77 = vector.broadcast %cst_31 : f32 to vector<8x128xf32>
      %78 = arith.mulf %77, %arg4 : vector<8x128xf32>
      %79 = arith.addf %76, %78 : vector<8x128xf32>
      %cst_32 = arith.constant 1.04164445 : f32
      %80 = vector.broadcast %cst_32 : f32 to vector<8x128xf32>
      %81 = arith.mulf %80, %46 : vector<8x128xf32>
      %82 = arith.subf %79, %81 : vector<8x128xf32>
      %cst_33 = arith.constant 0.37036562 : f32
      %83 = vector.broadcast %cst_33 : f32 to vector<8x128xf32>
      %84 = arith.mulf %83, %arg6 : vector<8x128xf32>
      %85 = arith.subf %82, %84 : vector<8x128xf32>
      %cst_34 = arith.constant -1.000000e+00 : f32
      %cst_35 = arith.constant 1.000000e+00 : f32
      %86 = vector.broadcast %cst_34 : f32 to vector<8x128xf32>
      %87 = arith.maximumf %86, %85 : vector<8x128xf32>
      %88 = vector.broadcast %cst_35 : f32 to vector<8x128xf32>
      %89 = arith.minimumf %88, %87 : vector<8x128xf32>
      %cst_36 = arith.constant 0.942863226 : f32
      %90 = vector.broadcast %cst_36 : f32 to vector<8x128xf32>
      %91 = arith.mulf %90, %89 : vector<8x128xf32>
      %cst_37 = arith.constant -1.88572645 : f32
      %92 = vector.broadcast %cst_37 : f32 to vector<8x128xf32>
      %93 = arith.mulf %92, %50 : vector<8x128xf32>
      %94 = arith.addf %91, %93 : vector<8x128xf32>
      %cst_38 = arith.constant 0.942863226 : f32
      %95 = vector.broadcast %cst_38 : f32 to vector<8x128xf32>
      %96 = arith.mulf %95, %arg8 : vector<8x128xf32>
      %97 = arith.addf %94, %96 : vector<8x128xf32>
      %cst_39 = arith.constant -1.88404572 : f32
      %98 = vector.broadcast %cst_39 : f32 to vector<8x128xf32>
      %99 = arith.mulf %98, %64 : vector<8x128xf32>
      %100 = arith.subf %97, %99 : vector<8x128xf32>
      %cst_40 = arith.constant 0.887407064 : f32
      %101 = vector.broadcast %cst_40 : f32 to vector<8x128xf32>
      %102 = arith.mulf %101, %arg10 : vector<8x128xf32>
      %103 = arith.subf %100, %102 : vector<8x128xf32>
      %cst_41 = arith.constant -1.000000e+00 : f32
      %cst_42 = arith.constant 1.000000e+00 : f32
      %104 = vector.broadcast %cst_41 : f32 to vector<8x128xf32>
      %105 = arith.maximumf %104, %103 : vector<8x128xf32>
      %106 = vector.broadcast %cst_42 : f32 to vector<8x128xf32>
      %107 = arith.minimumf %106, %105 : vector<8x128xf32>
      %108 = arith.mulf %107, %107 : vector<8x128xf32>
      %109 = arith.addf %69, %108 : vector<8x128xf32>
      %110 = vector.extract_strided_slice %30 {offsets = [2, 0, 0], sizes = [1, 8, 128], strides = [1, 1, 1]} : vector<8x8x128xf32> to vector<1x8x128xf32>
      %111 = vector.shape_cast %110 : vector<1x8x128xf32> to vector<8x128xf32>
      %cst_43 = arith.constant 1.12958086 : f32
      %112 = vector.broadcast %cst_43 : f32 to vector<8x128xf32>
      %113 = arith.mulf %112, %111 : vector<8x128xf32>
      %cst_44 = arith.constant 0.945510983 : f32
      %114 = vector.broadcast %cst_44 : f32 to vector<8x128xf32>
      %115 = arith.mulf %114, %71 : vector<8x128xf32>
      %116 = arith.addf %113, %115 : vector<8x128xf32>
      %cst_45 = arith.constant 0.336918175 : f32
      %117 = vector.broadcast %cst_45 : f32 to vector<8x128xf32>
      %118 = arith.mulf %117, %32 : vector<8x128xf32>
      %119 = arith.addf %116, %118 : vector<8x128xf32>
      %cst_46 = arith.constant 1.04164445 : f32
      %120 = vector.broadcast %cst_46 : f32 to vector<8x128xf32>
      %121 = arith.mulf %120, %85 : vector<8x128xf32>
      %122 = arith.subf %119, %121 : vector<8x128xf32>
      %cst_47 = arith.constant 0.37036562 : f32
      %123 = vector.broadcast %cst_47 : f32 to vector<8x128xf32>
      %124 = arith.mulf %123, %46 : vector<8x128xf32>
      %125 = arith.subf %122, %124 : vector<8x128xf32>
      %cst_48 = arith.constant -1.000000e+00 : f32
      %cst_49 = arith.constant 1.000000e+00 : f32
      %126 = vector.broadcast %cst_48 : f32 to vector<8x128xf32>
      %127 = arith.maximumf %126, %125 : vector<8x128xf32>
      %128 = vector.broadcast %cst_49 : f32 to vector<8x128xf32>
      %129 = arith.minimumf %128, %127 : vector<8x128xf32>
      %cst_50 = arith.constant 0.942863226 : f32
      %130 = vector.broadcast %cst_50 : f32 to vector<8x128xf32>
      %131 = arith.mulf %130, %129 : vector<8x128xf32>
      %cst_51 = arith.constant -1.88572645 : f32
      %132 = vector.broadcast %cst_51 : f32 to vector<8x128xf32>
      %133 = arith.mulf %132, %89 : vector<8x128xf32>
      %134 = arith.addf %131, %133 : vector<8x128xf32>
      %cst_52 = arith.constant 0.942863226 : f32
      %135 = vector.broadcast %cst_52 : f32 to vector<8x128xf32>
      %136 = arith.mulf %135, %50 : vector<8x128xf32>
      %137 = arith.addf %134, %136 : vector<8x128xf32>
      %cst_53 = arith.constant -1.88404572 : f32
      %138 = vector.broadcast %cst_53 : f32 to vector<8x128xf32>
      %139 = arith.mulf %138, %103 : vector<8x128xf32>
      %140 = arith.subf %137, %139 : vector<8x128xf32>
      %cst_54 = arith.constant 0.887407064 : f32
      %141 = vector.broadcast %cst_54 : f32 to vector<8x128xf32>
      %142 = arith.mulf %141, %64 : vector<8x128xf32>
      %143 = arith.subf %140, %142 : vector<8x128xf32>
      %cst_55 = arith.constant -1.000000e+00 : f32
      %cst_56 = arith.constant 1.000000e+00 : f32
      %144 = vector.broadcast %cst_55 : f32 to vector<8x128xf32>
      %145 = arith.maximumf %144, %143 : vector<8x128xf32>
      %146 = vector.broadcast %cst_56 : f32 to vector<8x128xf32>
      %147 = arith.minimumf %146, %145 : vector<8x128xf32>
      %148 = arith.mulf %147, %147 : vector<8x128xf32>
      %149 = arith.addf %109, %148 : vector<8x128xf32>
      %150 = vector.extract_strided_slice %30 {offsets = [3, 0, 0], sizes = [1, 8, 128], strides = [1, 1, 1]} : vector<8x8x128xf32> to vector<1x8x128xf32>
      %151 = vector.shape_cast %150 : vector<1x8x128xf32> to vector<8x128xf32>
      %cst_57 = arith.constant 1.12958086 : f32
      %152 = vector.broadcast %cst_57 : f32 to vector<8x128xf32>
      %153 = arith.mulf %152, %151 : vector<8x128xf32>
      %cst_58 = arith.constant 0.945510983 : f32
      %154 = vector.broadcast %cst_58 : f32 to vector<8x128xf32>
      %155 = arith.mulf %154, %111 : vector<8x128xf32>
      %156 = arith.addf %153, %155 : vector<8x128xf32>
      %cst_59 = arith.constant 0.336918175 : f32
      %157 = vector.broadcast %cst_59 : f32 to vector<8x128xf32>
      %158 = arith.mulf %157, %71 : vector<8x128xf32>
      %159 = arith.addf %156, %158 : vector<8x128xf32>
      %cst_60 = arith.constant 1.04164445 : f32
      %160 = vector.broadcast %cst_60 : f32 to vector<8x128xf32>
      %161 = arith.mulf %160, %125 : vector<8x128xf32>
      %162 = arith.subf %159, %161 : vector<8x128xf32>
      %cst_61 = arith.constant 0.37036562 : f32
      %163 = vector.broadcast %cst_61 : f32 to vector<8x128xf32>
      %164 = arith.mulf %163, %85 : vector<8x128xf32>
      %165 = arith.subf %162, %164 : vector<8x128xf32>
      %cst_62 = arith.constant -1.000000e+00 : f32
      %cst_63 = arith.constant 1.000000e+00 : f32
      %166 = vector.broadcast %cst_62 : f32 to vector<8x128xf32>
      %167 = arith.maximumf %166, %165 : vector<8x128xf32>
      %168 = vector.broadcast %cst_63 : f32 to vector<8x128xf32>
      %169 = arith.minimumf %168, %167 : vector<8x128xf32>
      %cst_64 = arith.constant 0.942863226 : f32
      %170 = vector.broadcast %cst_64 : f32 to vector<8x128xf32>
      %171 = arith.mulf %170, %169 : vector<8x128xf32>
      %cst_65 = arith.constant -1.88572645 : f32
      %172 = vector.broadcast %cst_65 : f32 to vector<8x128xf32>
      %173 = arith.mulf %172, %129 : vector<8x128xf32>
      %174 = arith.addf %171, %173 : vector<8x128xf32>
      %cst_66 = arith.constant 0.942863226 : f32
      %175 = vector.broadcast %cst_66 : f32 to vector<8x128xf32>
      %176 = arith.mulf %175, %89 : vector<8x128xf32>
      %177 = arith.addf %174, %176 : vector<8x128xf32>
      %cst_67 = arith.constant -1.88404572 : f32
      %178 = vector.broadcast %cst_67 : f32 to vector<8x128xf32>
      %179 = arith.mulf %178, %143 : vector<8x128xf32>
      %180 = arith.subf %177, %179 : vector<8x128xf32>
      %cst_68 = arith.constant 0.887407064 : f32
      %181 = vector.broadcast %cst_68 : f32 to vector<8x128xf32>
      %182 = arith.mulf %181, %103 : vector<8x128xf32>
      %183 = arith.subf %180, %182 : vector<8x128xf32>
      %cst_69 = arith.constant -1.000000e+00 : f32
      %cst_70 = arith.constant 1.000000e+00 : f32
      %184 = vector.broadcast %cst_69 : f32 to vector<8x128xf32>
      %185 = arith.maximumf %184, %183 : vector<8x128xf32>
      %186 = vector.broadcast %cst_70 : f32 to vector<8x128xf32>
      %187 = arith.minimumf %186, %185 : vector<8x128xf32>
      %188 = arith.mulf %187, %187 : vector<8x128xf32>
      %189 = arith.addf %149, %188 : vector<8x128xf32>
      %190 = vector.extract_strided_slice %30 {offsets = [4, 0, 0], sizes = [1, 8, 128], strides = [1, 1, 1]} : vector<8x8x128xf32> to vector<1x8x128xf32>
      %191 = vector.shape_cast %190 : vector<1x8x128xf32> to vector<8x128xf32>
      %cst_71 = arith.constant 1.12958086 : f32
      %192 = vector.broadcast %cst_71 : f32 to vector<8x128xf32>
      %193 = arith.mulf %192, %191 : vector<8x128xf32>
      %cst_72 = arith.constant 0.945510983 : f32
      %194 = vector.broadcast %cst_72 : f32 to vector<8x128xf32>
      %195 = arith.mulf %194, %151 : vector<8x128xf32>
      %196 = arith.addf %193, %195 : vector<8x128xf32>
      %cst_73 = arith.constant 0.336918175 : f32
      %197 = vector.broadcast %cst_73 : f32 to vector<8x128xf32>
      %198 = arith.mulf %197, %111 : vector<8x128xf32>
      %199 = arith.addf %196, %198 : vector<8x128xf32>
      %cst_74 = arith.constant 1.04164445 : f32
      %200 = vector.broadcast %cst_74 : f32 to vector<8x128xf32>
      %201 = arith.mulf %200, %165 : vector<8x128xf32>
      %202 = arith.subf %199, %201 : vector<8x128xf32>
      %cst_75 = arith.constant 0.37036562 : f32
      %203 = vector.broadcast %cst_75 : f32 to vector<8x128xf32>
      %204 = arith.mulf %203, %125 : vector<8x128xf32>
      %205 = arith.subf %202, %204 : vector<8x128xf32>
      %cst_76 = arith.constant -1.000000e+00 : f32
      %cst_77 = arith.constant 1.000000e+00 : f32
      %206 = vector.broadcast %cst_76 : f32 to vector<8x128xf32>
      %207 = arith.maximumf %206, %205 : vector<8x128xf32>
      %208 = vector.broadcast %cst_77 : f32 to vector<8x128xf32>
      %209 = arith.minimumf %208, %207 : vector<8x128xf32>
      %cst_78 = arith.constant 0.942863226 : f32
      %210 = vector.broadcast %cst_78 : f32 to vector<8x128xf32>
      %211 = arith.mulf %210, %209 : vector<8x128xf32>
      %cst_79 = arith.constant -1.88572645 : f32
      %212 = vector.broadcast %cst_79 : f32 to vector<8x128xf32>
      %213 = arith.mulf %212, %169 : vector<8x128xf32>
      %214 = arith.addf %211, %213 : vector<8x128xf32>
      %cst_80 = arith.constant 0.942863226 : f32
      %215 = vector.broadcast %cst_80 : f32 to vector<8x128xf32>
      %216 = arith.mulf %215, %129 : vector<8x128xf32>
      %217 = arith.addf %214, %216 : vector<8x128xf32>
      %cst_81 = arith.constant -1.88404572 : f32
      %218 = vector.broadcast %cst_81 : f32 to vector<8x128xf32>
      %219 = arith.mulf %218, %183 : vector<8x128xf32>
      %220 = arith.subf %217, %219 : vector<8x128xf32>
      %cst_82 = arith.constant 0.887407064 : f32
      %221 = vector.broadcast %cst_82 : f32 to vector<8x128xf32>
      %222 = arith.mulf %221, %143 : vector<8x128xf32>
      %223 = arith.subf %220, %222 : vector<8x128xf32>
      %cst_83 = arith.constant -1.000000e+00 : f32
      %cst_84 = arith.constant 1.000000e+00 : f32
      %224 = vector.broadcast %cst_83 : f32 to vector<8x128xf32>
      %225 = arith.maximumf %224, %223 : vector<8x128xf32>
      %226 = vector.broadcast %cst_84 : f32 to vector<8x128xf32>
      %227 = arith.minimumf %226, %225 : vector<8x128xf32>
      %228 = arith.mulf %227, %227 : vector<8x128xf32>
      %229 = arith.addf %189, %228 : vector<8x128xf32>
      %230 = vector.extract_strided_slice %30 {offsets = [5, 0, 0], sizes = [1, 8, 128], strides = [1, 1, 1]} : vector<8x8x128xf32> to vector<1x8x128xf32>
      %231 = vector.shape_cast %230 : vector<1x8x128xf32> to vector<8x128xf32>
      %cst_85 = arith.constant 1.12958086 : f32
      %232 = vector.broadcast %cst_85 : f32 to vector<8x128xf32>
      %233 = arith.mulf %232, %231 : vector<8x128xf32>
      %cst_86 = arith.constant 0.945510983 : f32
      %234 = vector.broadcast %cst_86 : f32 to vector<8x128xf32>
      %235 = arith.mulf %234, %191 : vector<8x128xf32>
      %236 = arith.addf %233, %235 : vector<8x128xf32>
      %cst_87 = arith.constant 0.336918175 : f32
      %237 = vector.broadcast %cst_87 : f32 to vector<8x128xf32>
      %238 = arith.mulf %237, %151 : vector<8x128xf32>
      %239 = arith.addf %236, %238 : vector<8x128xf32>
      %cst_88 = arith.constant 1.04164445 : f32
      %240 = vector.broadcast %cst_88 : f32 to vector<8x128xf32>
      %241 = arith.mulf %240, %205 : vector<8x128xf32>
      %242 = arith.subf %239, %241 : vector<8x128xf32>
      %cst_89 = arith.constant 0.37036562 : f32
      %243 = vector.broadcast %cst_89 : f32 to vector<8x128xf32>
      %244 = arith.mulf %243, %165 : vector<8x128xf32>
      %245 = arith.subf %242, %244 : vector<8x128xf32>
      %cst_90 = arith.constant -1.000000e+00 : f32
      %cst_91 = arith.constant 1.000000e+00 : f32
      %246 = vector.broadcast %cst_90 : f32 to vector<8x128xf32>
      %247 = arith.maximumf %246, %245 : vector<8x128xf32>
      %248 = vector.broadcast %cst_91 : f32 to vector<8x128xf32>
      %249 = arith.minimumf %248, %247 : vector<8x128xf32>
      %cst_92 = arith.constant 0.942863226 : f32
      %250 = vector.broadcast %cst_92 : f32 to vector<8x128xf32>
      %251 = arith.mulf %250, %249 : vector<8x128xf32>
      %cst_93 = arith.constant -1.88572645 : f32
      %252 = vector.broadcast %cst_93 : f32 to vector<8x128xf32>
      %253 = arith.mulf %252, %209 : vector<8x128xf32>
      %254 = arith.addf %251, %253 : vector<8x128xf32>
      %cst_94 = arith.constant 0.942863226 : f32
      %255 = vector.broadcast %cst_94 : f32 to vector<8x128xf32>
      %256 = arith.mulf %255, %169 : vector<8x128xf32>
      %257 = arith.addf %254, %256 : vector<8x128xf32>
      %cst_95 = arith.constant -1.88404572 : f32
      %258 = vector.broadcast %cst_95 : f32 to vector<8x128xf32>
      %259 = arith.mulf %258, %223 : vector<8x128xf32>
      %260 = arith.subf %257, %259 : vector<8x128xf32>
      %cst_96 = arith.constant 0.887407064 : f32
      %261 = vector.broadcast %cst_96 : f32 to vector<8x128xf32>
      %262 = arith.mulf %261, %183 : vector<8x128xf32>
      %263 = arith.subf %260, %262 : vector<8x128xf32>
      %cst_97 = arith.constant -1.000000e+00 : f32
      %cst_98 = arith.constant 1.000000e+00 : f32
      %264 = vector.broadcast %cst_97 : f32 to vector<8x128xf32>
      %265 = arith.maximumf %264, %263 : vector<8x128xf32>
      %266 = vector.broadcast %cst_98 : f32 to vector<8x128xf32>
      %267 = arith.minimumf %266, %265 : vector<8x128xf32>
      %268 = arith.mulf %267, %267 : vector<8x128xf32>
      %269 = arith.addf %229, %268 : vector<8x128xf32>
      %270 = vector.extract_strided_slice %30 {offsets = [6, 0, 0], sizes = [1, 8, 128], strides = [1, 1, 1]} : vector<8x8x128xf32> to vector<1x8x128xf32>
      %271 = vector.shape_cast %270 : vector<1x8x128xf32> to vector<8x128xf32>
      %cst_99 = arith.constant 1.12958086 : f32
      %272 = vector.broadcast %cst_99 : f32 to vector<8x128xf32>
      %273 = arith.mulf %272, %271 : vector<8x128xf32>
      %cst_100 = arith.constant 0.945510983 : f32
      %274 = vector.broadcast %cst_100 : f32 to vector<8x128xf32>
      %275 = arith.mulf %274, %231 : vector<8x128xf32>
      %276 = arith.addf %273, %275 : vector<8x128xf32>
      %cst_101 = arith.constant 0.336918175 : f32
      %277 = vector.broadcast %cst_101 : f32 to vector<8x128xf32>
      %278 = arith.mulf %277, %191 : vector<8x128xf32>
      %279 = arith.addf %276, %278 : vector<8x128xf32>
      %cst_102 = arith.constant 1.04164445 : f32
      %280 = vector.broadcast %cst_102 : f32 to vector<8x128xf32>
      %281 = arith.mulf %280, %245 : vector<8x128xf32>
      %282 = arith.subf %279, %281 : vector<8x128xf32>
      %cst_103 = arith.constant 0.37036562 : f32
      %283 = vector.broadcast %cst_103 : f32 to vector<8x128xf32>
      %284 = arith.mulf %283, %205 : vector<8x128xf32>
      %285 = arith.subf %282, %284 : vector<8x128xf32>
      %cst_104 = arith.constant -1.000000e+00 : f32
      %cst_105 = arith.constant 1.000000e+00 : f32
      %286 = vector.broadcast %cst_104 : f32 to vector<8x128xf32>
      %287 = arith.maximumf %286, %285 : vector<8x128xf32>
      %288 = vector.broadcast %cst_105 : f32 to vector<8x128xf32>
      %289 = arith.minimumf %288, %287 : vector<8x128xf32>
      %cst_106 = arith.constant 0.942863226 : f32
      %290 = vector.broadcast %cst_106 : f32 to vector<8x128xf32>
      %291 = arith.mulf %290, %289 : vector<8x128xf32>
      %cst_107 = arith.constant -1.88572645 : f32
      %292 = vector.broadcast %cst_107 : f32 to vector<8x128xf32>
      %293 = arith.mulf %292, %249 : vector<8x128xf32>
      %294 = arith.addf %291, %293 : vector<8x128xf32>
      %cst_108 = arith.constant 0.942863226 : f32
      %295 = vector.broadcast %cst_108 : f32 to vector<8x128xf32>
      %296 = arith.mulf %295, %209 : vector<8x128xf32>
      %297 = arith.addf %294, %296 : vector<8x128xf32>
      %cst_109 = arith.constant -1.88404572 : f32
      %298 = vector.broadcast %cst_109 : f32 to vector<8x128xf32>
      %299 = arith.mulf %298, %263 : vector<8x128xf32>
      %300 = arith.subf %297, %299 : vector<8x128xf32>
      %cst_110 = arith.constant 0.887407064 : f32
      %301 = vector.broadcast %cst_110 : f32 to vector<8x128xf32>
      %302 = arith.mulf %301, %223 : vector<8x128xf32>
      %303 = arith.subf %300, %302 : vector<8x128xf32>
      %cst_111 = arith.constant -1.000000e+00 : f32
      %cst_112 = arith.constant 1.000000e+00 : f32
      %304 = vector.broadcast %cst_111 : f32 to vector<8x128xf32>
      %305 = arith.maximumf %304, %303 : vector<8x128xf32>
      %306 = vector.broadcast %cst_112 : f32 to vector<8x128xf32>
      %307 = arith.minimumf %306, %305 : vector<8x128xf32>
      %308 = arith.mulf %307, %307 : vector<8x128xf32>
      %309 = arith.addf %269, %308 : vector<8x128xf32>
      %310 = vector.extract_strided_slice %30 {offsets = [7, 0, 0], sizes = [1, 8, 128], strides = [1, 1, 1]} : vector<8x8x128xf32> to vector<1x8x128xf32>
      %311 = vector.shape_cast %310 : vector<1x8x128xf32> to vector<8x128xf32>
      %cst_113 = arith.constant 1.12958086 : f32
      %312 = vector.broadcast %cst_113 : f32 to vector<8x128xf32>
      %313 = arith.mulf %312, %311 : vector<8x128xf32>
      %cst_114 = arith.constant 0.945510983 : f32
      %314 = vector.broadcast %cst_114 : f32 to vector<8x128xf32>
      %315 = arith.mulf %314, %271 : vector<8x128xf32>
      %316 = arith.addf %313, %315 : vector<8x128xf32>
      %cst_115 = arith.constant 0.336918175 : f32
      %317 = vector.broadcast %cst_115 : f32 to vector<8x128xf32>
      %318 = arith.mulf %317, %231 : vector<8x128xf32>
      %319 = arith.addf %316, %318 : vector<8x128xf32>
      %cst_116 = arith.constant 1.04164445 : f32
      %320 = vector.broadcast %cst_116 : f32 to vector<8x128xf32>
      %321 = arith.mulf %320, %285 : vector<8x128xf32>
      %322 = arith.subf %319, %321 : vector<8x128xf32>
      %cst_117 = arith.constant 0.37036562 : f32
      %323 = vector.broadcast %cst_117 : f32 to vector<8x128xf32>
      %324 = arith.mulf %323, %245 : vector<8x128xf32>
      %325 = arith.subf %322, %324 : vector<8x128xf32>
      %cst_118 = arith.constant -1.000000e+00 : f32
      %cst_119 = arith.constant 1.000000e+00 : f32
      %326 = vector.broadcast %cst_118 : f32 to vector<8x128xf32>
      %327 = arith.maximumf %326, %325 : vector<8x128xf32>
      %328 = vector.broadcast %cst_119 : f32 to vector<8x128xf32>
      %329 = arith.minimumf %328, %327 : vector<8x128xf32>
      %cst_120 = arith.constant 0.942863226 : f32
      %330 = vector.broadcast %cst_120 : f32 to vector<8x128xf32>
      %331 = arith.mulf %330, %329 : vector<8x128xf32>
      %cst_121 = arith.constant -1.88572645 : f32
      %332 = vector.broadcast %cst_121 : f32 to vector<8x128xf32>
      %333 = arith.mulf %332, %289 : vector<8x128xf32>
      %334 = arith.addf %331, %333 : vector<8x128xf32>
      %cst_122 = arith.constant 0.942863226 : f32
      %335 = vector.broadcast %cst_122 : f32 to vector<8x128xf32>
      %336 = arith.mulf %335, %249 : vector<8x128xf32>
      %337 = arith.addf %334, %336 : vector<8x128xf32>
      %cst_123 = arith.constant -1.88404572 : f32
      %338 = vector.broadcast %cst_123 : f32 to vector<8x128xf32>
      %339 = arith.mulf %338, %303 : vector<8x128xf32>
      %340 = arith.subf %337, %339 : vector<8x128xf32>
      %cst_124 = arith.constant 0.887407064 : f32
      %341 = vector.broadcast %cst_124 : f32 to vector<8x128xf32>
      %342 = arith.mulf %341, %263 : vector<8x128xf32>
      %343 = arith.subf %340, %342 : vector<8x128xf32>
      %cst_125 = arith.constant -1.000000e+00 : f32
      %cst_126 = arith.constant 1.000000e+00 : f32
      %344 = vector.broadcast %cst_125 : f32 to vector<8x128xf32>
      %345 = arith.maximumf %344, %343 : vector<8x128xf32>
      %346 = vector.broadcast %cst_126 : f32 to vector<8x128xf32>
      %347 = arith.minimumf %346, %345 : vector<8x128xf32>
      %348 = arith.mulf %347, %347 : vector<8x128xf32>
      %349 = arith.addf %309, %348 : vector<8x128xf32>
      %c0_i32_127 = arith.constant 0 : i32
      %350 = arith.cmpi sge, %arg3, %c0_i32_127 : i32
      %c200_i32 = arith.constant 200 : i32
      %351 = arith.cmpi slt, %arg3, %c200_i32 : i32
      %352 = arith.andi %350, %351 : i1
      %cst_128 = arith.constant 0.000000e+00 : f32
      %353 = vector.broadcast %cst_128 : f32 to vector<8x128xf32>
      %354 = arith.select %352, %349, %353 : vector<8x128xf32>
      %355 = arith.addf %arg12, %354 : vector<8x128xf32>
      %c50_i32 = arith.constant 50 : i32
      %356 = arith.cmpi sge, %arg3, %c50_i32 : i32
      %c250_i32_129 = arith.constant 250 : i32
      %357 = arith.cmpi slt, %arg3, %c250_i32_129 : i32
      %358 = arith.andi %356, %357 : i1
      %cst_130 = arith.constant 0.000000e+00 : f32
      %359 = vector.broadcast %cst_130 : f32 to vector<8x128xf32>
      %360 = arith.select %358, %349, %359 : vector<8x128xf32>
      %361 = arith.addf %arg13, %360 : vector<8x128xf32>
      scf.yield %311, %271, %325, %285, %329, %289, %343, %303, %355, %361 : vector<8x128xf32>, vector<8x128xf32>, vector<8x128xf32>, vector<8x128xf32>, vector<8x128xf32>, vector<8x128xf32>, vector<8x128xf32>, vector<8x128xf32>, vector<8x128xf32>, vector<8x128xf32>
    }
    %c250_i32_0 = arith.constant 250 : i32
    %cst_1 = arith.constant 6.250000e-04 : f32
    %3 = vector.broadcast %cst_1 : f32 to vector<8x128xf32>
    %4 = arith.mulf %2#8, %3 : vector<8x128xf32>
    %cst_2 = arith.constant 1.1920929E-7 : f32
    %5 = vector.broadcast %cst_2 : f32 to vector<8x128xf32>
    %6 = arith.addf %4, %5 : vector<8x128xf32>
    %7 = math.log %6 : vector<8x128xf32>
    %cst_3 = arith.constant 4.34294462 : f32
    %8 = vector.broadcast %cst_3 : f32 to vector<8x128xf32>
    %9 = arith.mulf %8, %7 : vector<8x128xf32>
    %cst_4 = arith.constant -6.910000e-01 : f32
    %10 = vector.broadcast %cst_4 : f32 to vector<8x128xf32>
    %11 = arith.addf %10, %9 : vector<8x128xf32>
    %c0 = arith.constant 0 : index
    %c0_5 = arith.constant 0 : index
    %c0_6 = arith.constant 0 : index
    %12 = vector.load %arg2[%c0, %c0_5, %c0_6] : memref<2x8x128xf32, #tpu.memory_space<vmem>>, vector<1x8x128xf32>
    %13 = vector.shape_cast %12 : vector<1x8x128xf32> to vector<8x128xf32>
    %14 = vector.shape_cast %11 : vector<8x128xf32> to vector<1x8x128xf32>
    tpu.vector_store %arg2[%c0, %c0_5, %c0_6], %14 {strides = array<i32>} : memref<2x8x128xf32, #tpu.memory_space<vmem>>, vector<1x8x128xf32>,
    %cst_7 = arith.constant 6.250000e-04 : f32
    %15 = vector.broadcast %cst_7 : f32 to vector<8x128xf32>
    %16 = arith.mulf %2#9, %15 : vector<8x128xf32>
    %cst_8 = arith.constant 1.1920929E-7 : f32
    %17 = vector.broadcast %cst_8 : f32 to vector<8x128xf32>
    %18 = arith.addf %16, %17 : vector<8x128xf32>
    %19 = math.log %18 : vector<8x128xf32>
    %cst_9 = arith.constant 4.34294462 : f32
    %20 = vector.broadcast %cst_9 : f32 to vector<8x128xf32>
    %21 = arith.mulf %20, %19 : vector<8x128xf32>
    %cst_10 = arith.constant -6.910000e-01 : f32
    %22 = vector.broadcast %cst_10 : f32 to vector<8x128xf32>
    %23 = arith.addf %22, %21 : vector<8x128xf32>
    %c1 = arith.constant 1 : index
    %c0_11 = arith.constant 0 : index
    %c0_12 = arith.constant 0 : index
    %24 = vector.load %arg2[%c1, %c0_11, %c0_12] : memref<2x8x128xf32, #tpu.memory_space<vmem>>, vector<1x8x128xf32>
    %25 = vector.shape_cast %24 : vector<1x8x128xf32> to vector<8x128xf32>
    %26 = vector.shape_cast %23 : vector<8x128xf32> to vector<1x8x128xf32>
    tpu.vector_store %arg2[%c1, %c0_11, %c0_12], %26 {strides = array<i32>} : memref<2x8x128xf32, #tpu.memory_space<vmem>>, vector<1x8x128xf32>,
    return
  }
  func.func @transform_0(%arg0: i32) -> (i32, i32, i32) {
    %c0_i32 = arith.constant 0 : i32
    %c0_i32_0 = arith.constant 0 : i32
    %c0_i32_1 = arith.constant 0 : i32
    return %arg0, %c0_i32, %c0_i32_0 : i32, i32, i32
  }
  func.func @transform_1(%arg0: i32) -> (i32, i32, i32) {
    %c0_i32 = arith.constant 0 : i32
    %c0_i32_0 = arith.constant 0 : i32
    %c0_i32_1 = arith.constant 0 : i32
    return %arg0, %c0_i32, %c0_i32_0 : i32, i32, i32
  }
}

</mosaic_0001>

<llo_original>
// kernel: sub.6
$region0: #{sub.6}
  #allocation0 [shape = 's32[1]{0}', space=sflag, size = 0x4, scoped, tag = 'scoped memory for sub.6']
  %s0 = inlined_call_operand.vmem [shape: f32[4,4000], index: 0, kind: input, shape index: {}]
  %s1 = inlined_call_operand.vmem [shape: f32[4,4000], index: 1, kind: input, shape index: {}]
  %s2 = inlined_call_operand.vmem [shape: f32[4,4000], index: 2, kind: output, shape index: {}]
  %v3 = vld [vmem:[%s0] sm:$0xf]
  %v4 = vld [vmem:[%s1] sm:$0xf]
  %5 = xla_tuple %v3, %v4
  %6 = xla_tuple %5
  %v7 = vsub.f32 %v3, %v4
  %8 = xla_tuple %v7
  %9 = vst [vmem:[%s2] sm:$0xf] %v7
  %s10 = scalar_lea.vmem %s0, 4
  %v11 = vld [vmem:[%s10] sm:$0xf]
  %s12 = scalar_lea.vmem %s1, 4
  %v13 = vld [vmem:[%s12] sm:$0xf]
  %14 = xla_tuple %v11, %v13
  %15 = xla_tuple %14
  %v16 = vsub.f32 %v11, %v13
  %17 = xla_tuple %v16
  %s18 = scalar_lea.vmem %s2, 4
  %19 = vst [vmem:[%s18] sm:$0xf] %v16
  %s20 = scalar_lea.vmem %s0, 8
  %v21 = vld [vmem:[%s20] sm:$0xf]
  %s22 = scalar_lea.vmem %s1, 8
  %v23 = vld [vmem:[%s22] sm:$0xf]
  %24 = xla_tuple %v21, %v23
  %25 = xla_tuple %24
  %v26 = vsub.f32 %v21, %v23
  %27 = xla_tuple %v26
  %s28 = scalar_lea.vmem %s2, 8
  %29 = vst [vmem:[%s28] sm:$0xf] %v26
  %s30 = scalar_lea.vmem %s0, 12
  %v31 = vld [vmem:[%s30] sm:$0xf]
  %s32 = scalar_lea.vmem %s1, 12
  %v33 = vld [vmem:[%s32] sm:$0xf]
  %34 = xla_tuple %v31, %v33
  %35 = xla_tuple %34
  %v36 = vsub.f32 %v31, %v33
  %37 = xla_tuple %v36
  %s38 = scalar_lea.vmem %s2, 12
  %39 = vst [vmem:[%s38] sm:$0xf] %v36
  %s40 = scalar_lea.vmem %s0, 16
  %v41 = vld [vmem:[%s40] sm:$0xf]
  %s42 = scalar_lea.vmem %s1, 16
  %v43 = vld [vmem:[%s42] sm:$0xf]
  %44 = xla_tuple %v41, %v43
  %45 = xla_tuple %44
  %v46 = vsub.f32 %v41, %v43
  %47 = xla_tuple %v46
  %s48 = scalar_lea.vmem %s2, 16
  %49 = vst [vmem:[%s48] sm:$0xf] %v46
  %s50 = scalar_lea.vmem %s0, 20
  %v51 = vld [vmem:[%s50] sm:$0xf]
  %s52 = scalar_lea.vmem %s1, 20
  %v53 = vld [vmem:[%s52] sm:$0xf]
  %54 = xla_tuple %v51, %v53
  %55 = xla_tuple %54
  %v56 = vsub.f32 %v51, %v53
  %57 = xla_tuple %v56
  %s58 = scalar_lea.vmem %s2, 20
  %59 = vst [vmem:[%s58] sm:$0xf] %v56
  %s60 = scalar_lea.vmem %s0, 24
  %v61 = vld [vmem:[%s60] sm:$0xf]
  %s62 = scalar_lea.vmem %s1, 24
  %v63 = vld [vmem:[%s62] sm:$0xf]
  %64 = xla_tuple %v61, %v63
  %65 = xla_tuple %64
  %v66 = vsub.f32 %v61, %v63
  %67 = xla_tuple %v66
  %s68 = scalar_lea.vmem %s2, 24
  %69 = vst [vmem:[%s68] sm:$0xf] %v66
  %s70 = scalar_lea.vmem %s0, 28
  %v71 = vld [vmem:[%s70] sm:$0xf]
  %s72 = scalar_lea.vmem %s1, 28
  %v73 = vld [vmem:[%s72] sm:$0xf]
  %74 = xla_tuple %v71, %v73
  %75 = xla_tuple %74
  %v76 = vsub.f32 %v71, %v73
  %77 = xla_tuple %v76
  %s78 = scalar_lea.vmem %s2, 28
  %79 = vst [vmem:[%s78] sm:$0xf] %v76
  %s80 = scalar_lea.vmem %s0, 32
  %v81 = vld [vmem:[%s80] sm:$0xf]
  %s82 = scalar_lea.vmem %s1, 32
  %v83 = vld [vmem:[%s82] sm:$0xf]
  %84 = xla_tuple %v81, %v83
  %85 = xla_tuple %84
  %v86 = vsub.f32 %v81, %v83
  %87 = xla_tuple %v86
  %s88 = scalar_lea.vmem %s2, 32
  %89 = vst [vmem:[%s88] sm:$0xf] %v86
  %s90 = scalar_lea.vmem %s0, 36
  %v91 = vld [vmem:[%s90] sm:$0xf]
  %s92 = scalar_lea.vmem %s1, 36
  %v93 = vld [vmem:[%s92] sm:$0xf]
  %94 = xla_tuple %v91, %v93
  %95 = xla_tuple %94
  %v96 = vsub.f32 %v91, %v93
  %97 = xla_tuple %v96
  %s98 = scalar_lea.vmem %s2, 36
  %99 = vst [vmem:[%s98] sm:$0xf] %v96
  %s100 = scalar_lea.vmem %s0, 40
  %v101 = vld [vmem:[%s100] sm:$0xf]
  %s102 = scalar_lea.vmem %s1, 40
  %v103 = vld [vmem:[%s102] sm:$0xf]
  %104 = xla_tuple %v101, %v103
  %105 = xla_tuple %104
  %v106 = vsub.f32 %v101, %v103
  %107 = xla_tuple %v106
  %s108 = scalar_lea.vmem %s2, 40
  %109 = vst [vmem:[%s108] sm:$0xf] %v106
  %s110 = scalar_lea.vmem %s0, 44
  %v111 = vld [vmem:[%s110] sm:$0xf]
  %s112 = scalar_lea.vmem %s1, 44
  %v113 = vld [vmem:[%s112] sm:$0xf]
  %114 = xla_tuple %v111, %v113
  %115 = xla_tuple %114
  %v116 = vsub.f32 %v111, %v113
  %117 = xla_tuple %v116
  %s118 = scalar_lea.vmem %s2, 44
  %119 = vst [vmem:[%s118] sm:$0xf] %v116
  %s120 = scalar_lea.vmem %s0, 48
  %v121 = vld [vmem:[%s120] sm:$0xf]
  %s122 = scalar_lea.vmem %s1, 48
  %v123 = vld [vmem:[%s122] sm:$0xf]
  %124 = xla_tuple %v121, %v123
  %125 = xla_tuple %124
  %v126 = vsub.f32 %v121, %v123
  %127 = xla_tuple %v126
  %s128 = scalar_lea.vmem %s2, 48
  %129 = vst [vmem:[%s128] sm:$0xf] %v126
  %s130 = scalar_lea.vmem %s0, 52
  %v131 = vld [vmem:[%s130] sm:$0xf]
  %s132 = scalar_lea.vmem %s1, 52
  %v133 = vld [vmem:[%s132] sm:$0xf]
  %134 = xla_tuple %v131, %v133
  %135 = xla_tuple %134
  %v136 = vsub.f32 %v131, %v133
  %137 = xla_tuple %v136
  %s138 = scalar_lea.vmem %s2, 52
  %139 = vst [vmem:[%s138] sm:$0xf] %v136
  %s140 = scalar_lea.vmem %s0, 56
  %v141 = vld [vmem:[%s140] sm:$0xf]
  %s142 = scalar_lea.vmem %s1, 56
  %v143 = vld [vmem:[%s142] sm:$0xf]
  %144 = xla_tuple %v141, %v143
  %145 = xla_tuple %144
  %v146 = vsub.f32 %v141, %v143
  %147 = xla_tuple %v146
  %s148 = scalar_lea.vmem %s2, 56
  %149 = vst [vmem:[%s148] sm:$0xf] %v146
  %s150 = scalar_lea.vmem %s0, 60
  %v151 = vld [vmem:[%s150] sm:$0xf]
  %s152 = scalar_lea.vmem %s1, 60
  %v153 = vld [vmem:[%s152] sm:$0xf]
  %154 = xla_tuple %v151, %v153
  %155 = xla_tuple %154
  %v156 = vsub.f32 %v151, %v153
  %157 = xla_tuple %v156
  %s158 = scalar_lea.vmem %s2, 60
  %159 = vst [vmem:[%s158] sm:$0xf] %v156
  %s160 = scalar_lea.vmem %s0, 64
  %v161 = vld [vmem:[%s160] sm:$0xf]
  %s162 = scalar_lea.vmem %s1, 64
  %v163 = vld [vmem:[%s162] sm:$0xf]
  %164 = xla_tuple %v161, %v163
  %165 = xla_tuple %164
  %v166 = vsub.f32 %v161, %v163
  %167 = xla_tuple %v166
  %s168 = scalar_lea.vmem %s2, 64
  %169 = vst [vmem:[%s168] sm:$0xf] %v166
  %s170 = scalar_lea.vmem %s0, 68
  %v171 = vld [vmem:[%s170] sm:$0xf]
  %s172 = scalar_lea.vmem %s1, 68
  %v173 = vld [vmem:[%s172] sm:$0xf]
  %174 = xla_tuple %v171, %v173
  %175 = xla_tuple %174
  %v176 = vsub.f32 %v171, %v173
  %177 = xla_tuple %v176
  %s178 = scalar_lea.vmem %s2, 68
  %179 = vst [vmem:[%s178] sm:$0xf] %v176
  %s180 = scalar_lea.vmem %s0, 72
  %v181 = vld [vmem:[%s180] sm:$0xf]
  %s182 = scalar_lea.vmem %s1, 72
  %v183 = vld [vmem:[%s182] sm:$0xf]
  %184 = xla_tuple %v181, %v183
  %185 = xla_tuple %184
  %v186 = vsub.f32 %v181, %v183
  %187 = xla_tuple %v186
  %s188 = scalar_lea.vmem %s2, 72
  %189 = vst [vmem:[%s188] sm:$0xf] %v186
  %s190 = scalar_lea.vmem %s0, 76
  %v191 = vld [vmem:[%s190] sm:$0xf]
  %s192 = scalar_lea.vmem %s1, 76
  %v193 = vld [vmem:[%s192] sm:$0xf]
  %194 = xla_tuple %v191, %v193
  %195 = xla_tuple %194
  %v196 = vsub.f32 %v191, %v193
  %197 = xla_tuple %v196
  %s198 = scalar_lea.vmem %s2, 76
  %199 = vst [vmem:[%s198] sm:$0xf] %v196
  %s200 = scalar_lea.vmem %s0, 80
  %v201 = vld [vmem:[%s200] sm:$0xf]
  %s202 = scalar_lea.vmem %s1, 80
  %v203 = vld [vmem:[%s202] sm:$0xf]
  %204 = xla_tuple %v201, %v203
  %205 = xla_tuple %204
  %v206 = vsub.f32 %v201, %v203
  %207 = xla_tuple %v206
  %s208 = scalar_lea.vmem %s2, 80
  %209 = vst [vmem:[%s208] sm:$0xf] %v206
  %s210 = scalar_lea.vmem %s0, 84
  %v211 = vld [vmem:[%s210] sm:$0xf]
  %s212 = scalar_lea.vmem %s1, 84
  %v213 = vld [vmem:[%s212] sm:$0xf]
  %214 = xla_tuple %v211, %v213
  %215 = xla_tuple %214
  %v216 = vsub.f32 %v211, %v213
  %217 = xla_tuple %v216
  %s218 = scalar_lea.vmem %s2, 84
  %219 = vst [vmem:[%s218] sm:$0xf] %v216
  %s220 = scalar_lea.vmem %s0, 88
  %v221 = vld [vmem:[%s220] sm:$0xf]
  %s222 = scalar_lea.vmem %s1, 88
  %v223 = vld [vmem:[%s222] sm:$0xf]
  %224 = xla_tuple %v221, %v223
  %225 = xla_tuple %224
  %v226 = vsub.f32 %v221, %v223
  %227 = xla_tuple %v226
  %s228 = scalar_lea.vmem %s2, 88
  %229 = vst [vmem:[%s228] sm:$0xf] %v226
  %s230 = scalar_lea.vmem %s0, 92
  %v231 = vld [vmem:[%s230] sm:$0xf]
  %s232 = scalar_lea.vmem %s1, 92
  %v233 = vld [vmem:[%s232] sm:$0xf]
  %234 = xla_tuple %v231, %v233
  %235 = xla_tuple %234
  %v236 = vsub.f32 %v231, %v233
  %237 = xla_tuple %v236
  %s238 = scalar_lea.vmem %s2, 92
  %239 = vst [vmem:[%s238] sm:$0xf] %v236
  %s240 = scalar_lea.vmem %s0, 96
  %v241 = vld [vmem:[%s240] sm:$0xf]
  %s242 = scalar_lea.vmem %s1, 96
  %v243 = vld [vmem:[%s242] sm:$0xf]
  %244 = xla_tuple %v241, %v243
  %245 = xla_tuple %244
  %v246 = vsub.f32 %v241, %v243
  %247 = xla_tuple %v246
  %s248 = scalar_lea.vmem %s2, 96
  %249 = vst [vmem:[%s248] sm:$0xf] %v246
  %s250 = scalar_lea.vmem %s0, 100
  %v251 = vld [vmem:[%s250] sm:$0xf]
  %s252 = scalar_lea.vmem %s1, 100
  %v253 = vld [vmem:[%s252] sm:$0xf]
  %254 = xla_tuple %v251, %v253
  %255 = xla_tuple %254
  %v256 = vsub.f32 %v251, %v253
  %257 = xla_tuple %v256
  %s258 = scalar_lea.vmem %s2, 100
  %259 = vst [vmem:[%s258] sm:$0xf] %v256
  %s260 = scalar_lea.vmem %s0, 104
  %v261 = vld [vmem:[%s260] sm:$0xf]
  %s262 = scalar_lea.vmem %s1, 104
  %v263 = vld [vmem:[%s262] sm:$0xf]
  %264 = xla_tuple %v261, %v263
  %265 = xla_tuple %264
  %v266 = vsub.f32 %v261, %v263
  %267 = xla_tuple %v266
  %s268 = scalar_lea.vmem %s2, 104
  %269 = vst [vmem:[%s268] sm:$0xf] %v266
  %s270 = scalar_lea.vmem %s0, 108
  %v271 = vld [vmem:[%s270] sm:$0xf]
  %s272 = scalar_lea.vmem %s1, 108
  %v273 = vld [vmem:[%s272] sm:$0xf]
  %274 = xla_tuple %v271, %v273
  %275 = xla_tuple %274
  %v276 = vsub.f32 %v271, %v273
  %277 = xla_tuple %v276
  %s278 = scalar_lea.vmem %s2, 108
  %279 = vst [vmem:[%s278] sm:$0xf] %v276
  %s280 = scalar_lea.vmem %s0, 112
  %v281 = vld [vmem:[%s280] sm:$0xf]
  %s282 = scalar_lea.vmem %s1, 112
  %v283 = vld [vmem:[%s282] sm:$0xf]
  %284 = xla_tuple %v281, %v283
  %285 = xla_tuple %284
  %v286 = vsub.f32 %v281, %v283
  %287 = xla_tuple %v286
  %s288 = scalar_lea.vmem %s2, 112
  %289 = vst [vmem:[%s288] sm:$0xf] %v286
  %s290 = scalar_lea.vmem %s0, 116
  %v291 = vld [vmem:[%s290] sm:$0xf]
  %s292 = scalar_lea.vmem %s1, 116
  %v293 = vld [vmem:[%s292] sm:$0xf]
  %294 = xla_tuple %v291, %v293
  %295 = xla_tuple %294
  %v296 = vsub.f32 %v291, %v293
  %297 = xla_tuple %v296
  %s298 = scalar_lea.vmem %s2, 116
  %299 = vst [vmem:[%s298] sm:$0xf] %v296
  %s300 = scalar_lea.vmem %s0, 120
  %v301 = vld [vmem:[%s300] sm:$0xf]
  %s302 = scalar_lea.vmem %s1, 120
  %v303 = vld [vmem:[%s302] sm:$0xf]
  %304 = xla_tuple %v301, %v303
  %305 = xla_tuple %304
  %v306 = vsub.f32 %v301, %v303
  %307 = xla_tuple %v306
  %s308 = scalar_lea.vmem %s2, 120
  %309 = vst [vmem:[%s308] sm:$0xf] %v306
  %s310 = scalar_lea.vmem %s0, 124
  %v311 = vld [vmem:[%s310] sm:$0xf]
  %s312 = scalar_lea.vmem %s1, 124
  %v313 = vld [vmem:[%s312] sm:$0xf]
  %314 = xla_tuple %v311, %v313
  %315 = xla_tuple %314
  %v316 = vsub.f32 %v311, %v313
  %317 = xla_tuple %v316
  %s318 = scalar_lea.vmem %s2, 124
  %319 = vst [vmem:[%s318] sm:$0xf] %v316

// kernel: tf_loudness_ratio.2
$region0: #{tf_loudness_ratio.2}
  #allocation0 [shape = 'u32[]', space=smem, size = 0x4, offset = 0x4, fixed_abs, tag = 'smem constant byte address 0x4 - core index']
  #allocation1 [shape = 'u32[144,128]{1,0:T(1,128)}', space=vmem, size = 0x12000, scoped, tag = 'internal scratch']
  %s0 = inlined_call_operand.vmem [shape: f32[64,384], index: 0, kind: input, shape index: {}]
  %s1 = inlined_call_operand.vmem [shape: f32[384,512], index: 1, kind: input, shape index: {}]
  %s2 = inlined_call_operand.vmem [shape: f32[64,512], index: 2, kind: output, shape index: {}]
  %s3 = sld [smem:[#allocation0]]
  $region18: #{tf_loudness_ratio.2} parent=0
    _
  %s5 = ssub.s32 1, %s3
  %s6 = scalar_select 0, %s5, %s3
  // Predicated region
  $region2: #{tf_loudness_ratio.2} parent=0 // pred_check
    _
  $region3: #{tf_loudness_ratio.2} parent=0 // pred_check_branch
    %8 = sbr.rel (0) target = $region5
  $region4: #{tf_loudness_ratio.2} parent=0 // pred_region
    _
  $region5: #{tf_loudness_ratio.2} parent=0 // pred_fallthru
    _
  // Predicated region
  $region6: #{tf_loudness_ratio.2} parent=0 // pred_check
    _
  $region7: #{tf_loudness_ratio.2} parent=0 // pred_check_branch
    %10 = sbr.rel (0) target = $region9
  $region8: #{tf_loudness_ratio.2} parent=0 // pred_region
    _
  $region9: #{tf_loudness_ratio.2} parent=0 // pred_fallthru
    _
  %v11 = vld [vmem:[%s0] sm:$0xff]
  %v12 = vld [vmem:[%s0 + $0x8] sm:$0xff]
  %v13 = vld [vmem:[%s0 + $0x10] sm:$0xff]
  %v14 = vld [vmem:[%s0 + $0x18] sm:$0xff]
  %v15 = vld [vmem:[%s0 + $0x20] sm:$0xff]
  %v16 = vld [vmem:[%s0 + $0x28] sm:$0xff]
  %v17 = vld [vmem:[%s0 + $0x30] sm:$0xff]
  %v18 = vld [vmem:[%s0 + $0x38] sm:$0xff]
  %v19 = vld [vmem:[%s0 + $0x40] sm:$0xff]
  %v20 = vld [vmem:[%s0 + $0x48] sm:$0xff]
  %v21 = vld [vmem:[%s0 + $0x50] sm:$0xff]
  %v22 = vld [vmem:[%s0 + $0x58] sm:$0xff]
  %v23 = vld [vmem:[%s0 + $0x60] sm:$0xff]
  %v24 = vld [vmem:[%s0 + $0x68] sm:$0xff]
  %v25 = vld [vmem:[%s0 + $0x70] sm:$0xff]
  %v26 = vld [vmem:[%s0 + $0x78] sm:$0xff]
  %v27 = vld [vmem:[%s0 + $0x80] sm:$0xff]
  %v28 = vld [vmem:[%s0 + $0x88] sm:$0xff]
  %v29 = vld [vmem:[%s0 + $0x90] sm:$0xff]
  %v30 = vld [vmem:[%s0 + $0x98] sm:$0xff]
  %v31 = vld [vmem:[%s0 + $0xa0] sm:$0xff]
  %v32 = vld [vmem:[%s0 + $0xa8] sm:$0xff]
  %v33 = vld [vmem:[%s0 + $0xb0] sm:$0xff]
  %v34 = vld [vmem:[%s0 + $0xb8] sm:$0xff]
  %v35 = vld [vmem:[%s1] sm:$0xff]
  %v36 = vld [vmem:[%s1 + $0x8] sm:$0xff]
  %v37 = vld [vmem:[%s1 + $0x10] sm:$0xff]
  %v38 = vld [vmem:[%s1 + $0x18] sm:$0xff]
  %v39 = vld [vmem:[%s1 + $0x20] sm:$0xff]
  %v40 = vld [vmem:[%s1 + $0x28] sm:$0xff]
  %v41 = vld [vmem:[%s1 + $0x30] sm:$0xff]
  %v42 = vld [vmem:[%s1 + $0x38] sm:$0xff]
  %v43 = vld [vmem:[%s1 + $0x40] sm:$0xff]
  %v44 = vld [vmem:[%s1 + $0x48] sm:$0xff]
  %v45 = vld [vmem:[%s1 + $0x50] sm:$0xff]
  %v46 = vld [vmem:[%s1 + $0x58] sm:$0xff]
  %v47 = vld [vmem:[%s1 + $0x60] sm:$0xff]
  %v48 = vld [vmem:[%s1 + $0x68] sm:$0xff]
  %v49 = vld [vmem:[%s1 + $0x70] sm:$0xff]
  %v50 = vld [vmem:[%s1 + $0x78] sm:$0xff]
  %v51 = vld [vmem:[%s1 + $0x80] sm:$0xff]
  %v52 = vld [vmem:[%s1 + $0x88] sm:$0xff]
  %v53 = vld [vmem:[%s1 + $0x90] sm:$0xff]
  %v54 = vld [vmem:[%s1 + $0x98] sm:$0xff]
  %v55 = vld [vmem:[%s1 + $0xa0] sm:$0xff]
  %v56 = vld [vmem:[%s1 + $0xa8] sm:$0xff]
  %v57 = vld [vmem:[%s1 + $0xb0] sm:$0xff]
  %v58 = vld [vmem:[%s1 + $0xb8] sm:$0xff]
  %v59 = vld [vmem:[%s1 + $0xc0] sm:$0xff]
  %v60 = vld [vmem:[%s1 + $0xc8] sm:$0xff]
  %v61 = vld [vmem:[%s1 + $0xd0] sm:$0xff]
  %v62 = vld [vmem:[%s1 + $0xd8] sm:$0xff]
  %v63 = vld [vmem:[%s1 + $0xe0] sm:$0xff]
  %v64 = vld [vmem:[%s1 + $0xe8] sm:$0xff]
  %v65 = vld [vmem:[%s1 + $0xf0] sm:$0xff]
  %v66 = vld [vmem:[%s1 + $0xf8] sm:$0xff]
  %v67 = vld [vmem:[%s1 + $0x100] sm:$0xff]
  %v68 = vld [vmem:[%s1 + $0x108] sm:$0xff]
  %v69 = vld [vmem:[%s1 + $0x110] sm:$0xff]
  %v70 = vld [vmem:[%s1 + $0x118] sm:$0xff]
  %v71 = vld [vmem:[%s1 + $0x120] sm:$0xff]
  %v72 = vld [vmem:[%s1 + $0x128] sm:$0xff]
  %v73 = vld [vmem:[%s1 + $0x130] sm:$0xff]
  %v74 = vld [vmem:[%s1 + $0x138] sm:$0xff]
  %v75 = vld [vmem:[%s1 + $0x140] sm:$0xff]
  %v76 = vld [vmem:[%s1 + $0x148] sm:$0xff]
  %v77 = vld [vmem:[%s1 + $0x150] sm:$0xff]
  %v78 = vld [vmem:[%s1 + $0x158] sm:$0xff]
  %v79 = vld [vmem:[%s1 + $0x160] sm:$0xff]
  %v80 = vld [vmem:[%s1 + $0x168] sm:$0xff]
  %v81 = vld [vmem:[%s1 + $0x170] sm:$0xff]
  %v82 = vld [vmem:[%s1 + $0x178] sm:$0xff]
  %v83 = vld [vmem:[%s1 + $0x180] sm:$0xff]
  %v84 = vld [vmem:[%s1 + $0x188] sm:$0xff]
  %v85 = vld [vmem:[%s1 + $0x190] sm:$0xff]
  %v86 = vld [vmem:[%s1 + $0x198] sm:$0xff]
  %v87 = vld [vmem:[%s1 + $0x1a0] sm:$0xff]
  %v88 = vld [vmem:[%s1 + $0x1a8] sm:$0xff]
  %v89 = vld [vmem:[%s1 + $0x1b0] sm:$0xff]
  %v90 = vld [vmem:[%s1 + $0x1b8] sm:$0xff]
  %v91 = vld [vmem:[%s1 + $0x1c0] sm:$0xff]
  %v92 = vld [vmem:[%s1 + $0x1c8] sm:$0xff]
  %v93 = vld [vmem:[%s1 + $0x1d0] sm:$0xff]
  %v94 = vld [vmem:[%s1 + $0x1d8] sm:$0xff]
  %v95 = vld [vmem:[%s1 + $0x1e0] sm:$0xff]
  %v96 = vld [vmem:[%s1 + $0x1e8] sm:$0xff]
  %v97 = vld [vmem:[%s1 + $0x1f0] sm:$0xff]
  %v98 = vld [vmem:[%s1 + $0x1f8] sm:$0xff]
  %v99 = vld [vmem:[%s1 + $0x200] sm:$0xff]
  %v100 = vld [vmem:[%s1 + $0x208] sm:$0xff]
  %v101 = vld [vmem:[%s1 + $0x210] sm:$0xff]
  %v102 = vld [vmem:[%s1 + $0x218] sm:$0xff]
  %v103 = vld [vmem:[%s1 + $0x220] sm:$0xff]
  %v104 = vld [vmem:[%s1 + $0x228] sm:$0xff]
  %v105 = vld [vmem:[%s1 + $0x230] sm:$0xff]
  %v106 = vld [vmem:[%s1 + $0x238] sm:$0xff]
  %v107 = vld [vmem:[%s1 + $0x240] sm:$0xff]
  %v108 = vld [vmem:[%s1 + $0x248] sm:$0xff]
  %v109 = vld [vmem:[%s1 + $0x250] sm:$0xff]
  %v110 = vld [vmem:[%s1 + $0x258] sm:$0xff]
  %v111 = vld [vmem:[%s1 + $0x260] sm:$0xff]
  %v112 = vld [vmem:[%s1 + $0x268] sm:$0xff]
  %v113 = vld [vmem:[%s1 + $0x270] sm:$0xff]
  %v114 = vld [vmem:[%s1 + $0x278] sm:$0xff]
  %v115 = vld [vmem:[%s1 + $0x280] sm:$0xff]
  %v116 = vld [vmem:[%s1 + $0x288] sm:$0xff]
  %v117 = vld [vmem:[%s1 + $0x290] sm:$0xff]
  %v118 = vld [vmem:[%s1 + $0x298] sm:$0xff]
  %v119 = vld [vmem:[%s1 + $0x2a0] sm:$0xff]
  %v120 = vld [vmem:[%s1 + $0x2a8] sm:$0xff]
  %v121 = vld [vmem:[%s1 + $0x2b0] sm:$0xff]
  %v122 = vld [vmem:[%s1 + $0x2b8] sm:$0xff]
  %v123 = vld [vmem:[%s1 + $0x2c0] sm:$0xff]
  %v124 = vld [vmem:[%s1 + $0x2c8] sm:$0xff]
  %v125 = vld [vmem:[%s1 + $0x2d0] sm:$0xff]
  %v126 = vld [vmem:[%s1 + $0x2d8] sm:$0xff]
  %v127 = vld [vmem:[%s1 + $0x2e0] sm:$0xff]
  %v128 = vld [vmem:[%s1 + $0x2e8] sm:$0xff]
  %v129 = vld [vmem:[%s1 + $0x2f0] sm:$0xff]
  %v130 = vld [vmem:[%s1 + $0x2f8] sm:$0xff]
  %v131 = vld [vmem:[%s1 + $0x300] sm:$0xff]
  %v132 = vld [vmem:[%s1 + $0x308] sm:$0xff]
  %v133 = vld [vmem:[%s1 + $0x310] sm:$0xff]
  %v134 = vld [vmem:[%s1 + $0x318] sm:$0xff]
  %v135 = vld [vmem:[%s1 + $0x320] sm:$0xff]
  %v136 = vld [vmem:[%s1 + $0x328] sm:$0xff]
  %v137 = vld [vmem:[%s1 + $0x330] sm:$0xff]
  %v138 = vld [vmem:[%s1 + $0x338] sm:$0xff]
  %v139 = vld [vmem:[%s1 + $0x340] sm:$0xff]
  %v140 = vld [vmem:[%s1 + $0x348] sm:$0xff]
  %v141 = vld [vmem:[%s1 + $0x350] sm:$0xff]
  %v142 = vld [vmem:[%s1 + $0x358] sm:$0xff]
  %v143 = vld [vmem:[%s1 + $0x360] sm:$0xff]
  %v144 = vld [vmem:[%s1 + $0x368] sm:$0xff]
  %v145 = vld [vmem:[%s1 + $0x370] sm:$0xff]
  %v146 = vld [vmem:[%s1 + $0x378] sm:$0xff]
  %v147 = vld [vmem:[%s1 + $0x380] sm:$0xff]
  %v148 = vld [vmem:[%s1 + $0x388] sm:$0xff]
  %v149 = vld [vmem:[%s1 + $0x390] sm:$0xff]
  %v150 = vld [vmem:[%s1 + $0x398] sm:$0xff]
  %v151 = vld [vmem:[%s1 + $0x3a0] sm:$0xff]
  %v152 = vld [vmem:[%s1 + $0x3a8] sm:$0xff]
  %v153 = vld [vmem:[%s1 + $0x3b0] sm:$0xff]
  %v154 = vld [vmem:[%s1 + $0x3b8] sm:$0xff]
  %v155 = vld [vmem:[%s1 + $0x3c0] sm:$0xff]
  %v156 = vld [vmem:[%s1 + $0x3c8] sm:$0xff]
  %v157 = vld [vmem:[%s1 + $0x3d0] sm:$0xff]
  %v158 = vld [vmem:[%s1 + $0x3d8] sm:$0xff]
  %v159 = vld [vmem:[%s1 + $0x3e0] sm:$0xff]
  %v160 = vld [vmem:[%s1 + $0x3e8] sm:$0xff]
  %v161 = vld [vmem:[%s1 + $0x3f0] sm:$0xff]
  %v162 = vld [vmem:[%s1 + $0x3f8] sm:$0xff]
  %v163 = vld [vmem:[%s1 + $0x400] sm:$0xff]
  %v164 = vld [vmem:[%s1 + $0x408] sm:$0xff]
  %v165 = vld [vmem:[%s1 + $0x410] sm:$0xff]
  %v166 = vld [vmem:[%s1 + $0x418] sm:$0xff]
  %v167 = vld [vmem:[%s1 + $0x420] sm:$0xff]
  %v168 = vld [vmem:[%s1 + $0x428] sm:$0xff]
  %v169 = vld [vmem:[%s1 + $0x430] sm:$0xff]
  %v170 = vld [vmem:[%s1 + $0x438] sm:$0xff]
  %v171 = vld [vmem:[%s1 + $0x440] sm:$0xff]
  %v172 = vld [vmem:[%s1 + $0x448] sm:$0xff]
  %v173 = vld [vmem:[%s1 + $0x450] sm:$0xff]
  %v174 = vld [vmem:[%s1 + $0x458] sm:$0xff]
  %v175 = vld [vmem:[%s1 + $0x460] sm:$0xff]
  %v176 = vld [vmem:[%s1 + $0x468] sm:$0xff]
  %v177 = vld [vmem:[%s1 + $0x470] sm:$0xff]
  %v178 = vld [vmem:[%s1 + $0x478] sm:$0xff]
  %v179 = vld [vmem:[%s1 + $0x480] sm:$0xff]
  %v180 = vld [vmem:[%s1 + $0x488] sm:$0xff]
  %v181 = vld [vmem:[%s1 + $0x490] sm:$0xff]
  %v182 = vld [vmem:[%s1 + $0x498] sm:$0xff]
  %v183 = vld [vmem:[%s1 + $0x4a0] sm:$0xff]
  %v184 = vld [vmem:[%s1 + $0x4a8] sm:$0xff]
  %v185 = vld [vmem:[%s1 + $0x4b0] sm:$0xff]
  %v186 = vld [vmem:[%s1 + $0x4b8] sm:$0xff]
  %v187 = vld [vmem:[%s1 + $0x4c0] sm:$0xff]
  %v188 = vld [vmem:[%s1 + $0x4c8] sm:$0xff]
  %v189 = vld [vmem:[%s1 + $0x4d0] sm:$0xff]
  %v190 = vld [vmem:[%s1 + $0x4d8] sm:$0xff]
  %v191 = vld [vmem:[%s1 + $0x4e0] sm:$0xff]
  %v192 = vld [vmem:[%s1 + $0x4e8] sm:$0xff]
  %v193 = vld [vmem:[%s1 + $0x4f0] sm:$0xff]
  %v194 = vld [vmem:[%s1 + $0x4f8] sm:$0xff]
  %v195 = vld [vmem:[%s1 + $0x500] sm:$0xff]
  %v196 = vld [vmem:[%s1 + $0x508] sm:$0xff]
  %v197 = vld [vmem:[%s1 + $0x510] sm:$0xff]
  %v198 = vld [vmem:[%s1 + $0x518] sm:$0xff]
  %v199 = vld [vmem:[%s1 + $0x520] sm:$0xff]
  %v200 = vld [vmem:[%s1 + $0x528] sm:$0xff]
  %v201 = vld [vmem:[%s1 + $0x530] sm:$0xff]
  %v202 = vld [vmem:[%s1 + $0x538] sm:$0xff]
  %v203 = vld [vmem:[%s1 + $0x540] sm:$0xff]
  %v204 = vld [vmem:[%s1 + $0x548] sm:$0xff]
  %v205 = vld [vmem:[%s1 + $0x550] sm:$0xff]
  %v206 = vld [vmem:[%s1 + $0x558] sm:$0xff]
  %v207 = vld [vmem:[%s1 + $0x560] sm:$0xff]
  %v208 = vld [vmem:[%s1 + $0x568] sm:$0xff]
  %v209 = vld [vmem:[%s1 + $0x570] sm:$0xff]
  %v210 = vld [vmem:[%s1 + $0x578] sm:$0xff]
  %v211 = vld [vmem:[%s1 + $0x580] sm:$0xff]
  %v212 = vld [vmem:[%s1 + $0x588] sm:$0xff]
  %v213 = vld [vmem:[%s1 + $0x590] sm:$0xff]
  %v214 = vld [vmem:[%s1 + $0x598] sm:$0xff]
  %v215 = vld [vmem:[%s1 + $0x5a0] sm:$0xff]
  %v216 = vld [vmem:[%s1 + $0x5a8] sm:$0xff]
  %v217 = vld [vmem:[%s1 + $0x5b0] sm:$0xff]
  %v218 = vld [vmem:[%s1 + $0x5b8] sm:$0xff]
  %v219 = vld [vmem:[%s1 + $0x5c0] sm:$0xff]
  %v220 = vld [vmem:[%s1 + $0x5c8] sm:$0xff]
  %v221 = vld [vmem:[%s1 + $0x5d0] sm:$0xff]
  %v222 = vld [vmem:[%s1 + $0x5d8] sm:$0xff]
  %v223 = vld [vmem:[%s1 + $0x5e0] sm:$0xff]
  %v224 = vld [vmem:[%s1 + $0x5e8] sm:$0xff]
  %v225 = vld [vmem:[%s1 + $0x5f0] sm:$0xff]
  %v226 = vld [vmem:[%s1 + $0x5f8] sm:$0xff]
  %227 = vmatprep.subr.mxu0 %v36
  %228 = vmatpush1.msra.mxu0 %v35
  %229 = vmatprep.subr.mxu0 %v40
  %230 = vmatpush1.msra.mxu0 %v39
  %231 = vmatprep.subr.mxu0 %v44
  %232 = vmatpush1.msra.mxu0 %v43
  %233 = vmatprep.subr.mxu0 %v48
  %234 = vmatpush1.msra.mxu0 %v47
  %235 = vmatprep.subr.mxu0 %v52
  %236 = vmatpush1.msra.mxu0 %v51
  %237 = vmatprep.subr.mxu0 %v56
  %238 = vmatpush1.msra.mxu0 %v55
  %239 = vmatprep.subr.mxu0 %v60
  %240 = vmatpush1.msra.mxu0 %v59
  %241 = vmatprep.subr.mxu0 %v64
  %242 = vmatpush1.msra.mxu0 %v63
  %243 = vmatprep.subr.mxu0 %v68
  %244 = vmatpush1.msra.mxu0 %v67
  %245 = vmatprep.subr.mxu0 %v72
  %246 = vmatpush1.msra.mxu0 %v71
  %247 = vmatprep.subr.mxu0 %v76
  %248 = vmatpush1.msra.mxu0 %v75
  %249 = vmatprep.subr.mxu0 %v80
  %250 = vmatpush1.msra.mxu0 %v79
  %251 = vmatprep.subr.mxu0 %v84
  %252 = vmatpush1.msra.mxu0 %v83
  %253 = vmatprep.subr.mxu0 %v88
  %254 = vmatpush1.msra.mxu0 %v87
  %255 = vmatprep.subr.mxu0 %v92
  %256 = vmatpush1.msra.mxu0 %v91
  %257 = vmatprep.subr.mxu0 %v96
  %258 = vmatpush1.msra.mxu0 %v95
  %259 = vmatprep.subr.mxu0 %v100
  %260 = vmatpush1.msra.mxu0 %v99
  %261 = vmatprep.subr.mxu0 %v104
  %262 = vmatpush1.msra.mxu0 %v103
  %263 = vmatprep.subr.mxu0 %v108
  %264 = vmatpush1.msra.mxu0 %v107
  %265 = vmatprep.subr.mxu0 %v112
  %266 = vmatpush1.msra.mxu0 %v111
  %267 = vmatprep.subr.mxu0 %v116
  %268 = vmatpush1.msra.mxu0 %v115
  %269 = vmatprep.subr.mxu0 %v120
  %270 = vmatpush1.msra.mxu0 %v119
  %271 = vmatprep.subr.mxu0 %v124
  %272 = vmatpush1.msra.mxu0 %v123
  %273 = vmatprep.subr.mxu0 %v128
  %274 = vmatpush1.msra.mxu0 %v127
  %275 = vmatprep.subr.mxu0 %v132
  %276 = vmatpush1.msra.mxu0 %v131
  %277 = vmatprep.subr.mxu0 %v136
  %278 = vmatpush1.msra.mxu0 %v135
  %279 = vmatprep.subr.mxu0 %v140
  %280 = vmatpush1.msra.mxu0 %v139
  %281 = vmatprep.subr.mxu0 %v144
  %282 = vmatpush1.msra.mxu0 %v143
  %283 = vmatprep.subr.mxu0 %v148
  %284 = vmatpush1.msra.mxu0 %v147
  %285 = vmatprep.subr.mxu0 %v152
  %286 = vmatpush1.msra.mxu0 %v151
  %287 = vmatprep.subr.mxu0 %v156
  %288 = vmatpush1.msra.mxu0 %v155
  %289 = vmatprep.subr.mxu0 %v160
  %290 = vmatpush1.msra.mxu0 %v159
  %291 = vmatprep.mubr.f32.mxu0 %v12
  %292 = vmatmul.mubr.f32.gmra.mrb[0].mxu0 %v11
  %v293 = vpop.f32.mrb[0].mxu0
  %v294 = vadd.f32 0.0, %v293
  %v295 = vpop.f32.mrb[0].mxu0
  %v296 = vadd.f32 0.0, %v295
  %297 = vmatprep.mubr.f32.mxu0 %v15
  %298 = vmatmul.mubr.f32.gmra.mrb[0].mxu0 %v14
  %v299 = vpop.f32.mrb[0].mxu0
  %v300 = vadd.f32 0.0, %v299
  %v301 = vpop.f32.mrb[0].mxu0
  %v302 = vadd.f32 0.0, %v301
  %303 = vmatprep.mubr.f32.mxu0 %v18
  %304 = vmatmul.mubr.f32.gmra.mrb[0].mxu0 %v17
  %v305 = vpop.f32.mrb[0].mxu0
  %v306 = vadd.f32 0.0, %v305
  %v307 = vpop.f32.mrb[0].mxu0
  %v308 = vadd.f32 0.0, %v307
  %309 = vmatprep.mubr.f32.mxu0 %v21
  %310 = vmatmul.mubr.f32.gmra.mrb[0].mxu0 %v20
  %v311 = vpop.f32.mrb[0].mxu0
  %v312 = vadd.f32 0.0, %v311
  %v313 = vpop.f32.mrb[0].mxu0
  %v314 = vadd.f32 0.0, %v313
  %315 = vmatprep.mubr.f32.mxu0 %v24
  %316 = vmatmul.mubr.f32.gmra.mrb[0].mxu0 %v23
  %v317 = vpop.f32.mrb[0].mxu0
  %v318 = vadd.f32 0.0, %v317
  %v319 = vpop.f32.mrb[0].mxu0
  %v320 = vadd.f32 0.0, %v319
  %321 = vmatprep.mubr.f32.mxu0 %v27
  %322 = vmatmul.mubr.f32.gmra.mrb[0].mxu0 %v26
  %v323 = vpop.f32.mrb[0].mxu0
  %v324 = vadd.f32 0.0, %v323
  %v325 = vpop.f32.mrb[0].mxu0
  %v326 = vadd.f32 0.0, %v325
  %327 = vmatprep.mubr.f32.mxu0 %v30
  %328 = vmatmul.mubr.f32.gmra.mrb[0].mxu0 %v29
  %v329 = vpop.f32.mrb[0].mxu0
  %v330 = vadd.f32 0.0, %v329
  %v331 = vpop.f32.mrb[0].mxu0
  %v332 = vadd.f32 0.0, %v331
  %333 = vmatprep.mubr.f32.mxu0 %v33
  %334 = vmatmul.mubr.f32.gmra.mrb[0].mxu0 %v32
  %v335 = vpop.f32.mrb[0].mxu0
  %v336 = vadd.f32 0.0, %v335
  %v337 = vpop.f32.mrb[0].mxu0
  %v338 = vadd.f32 0.0, %v337
  %339 = vdwg.mxu0
  %340 = vmatprep.subr.mxu0 %v164
  %341 = vmatpush1.msra.mxu0 %v163
  %342 = vmatprep.subr.mxu0 %v168
  %343 = vmatpush1.msra.mxu0 %v167
  %344 = vmatprep.subr.mxu0 %v172
  %345 = vmatpush1.msra.mxu0 %v171
  %346 = vmatprep.subr.mxu0 %v176
  %347 = vmatpush1.msra.mxu0 %v175
  %348 = vmatprep.subr.mxu0 %v180
  %349 = vmatpush1.msra.mxu0 %v179
  %350 = vmatprep.subr.mxu0 %v184
  %351 = vmatpush1.msra.mxu0 %v183
  %352 = vmatprep.subr.mxu0 %v188
  %353 = vmatpush1.msra.mxu0 %v187
  %354 = vmatprep.subr.mxu0 %v192
  %355 = vmatpush1.msra.mxu0 %v191
  %356 = vmatprep.subr.mxu0 %v196
  %357 = vmatpush1.msra.mxu0 %v195
  %358 = vmatprep.subr.mxu0 %v200
  %359 = vmatpush1.msra.mxu0 %v199
  %360 = vmatprep.subr.mxu0 %v204
  %361 = vmatpush1.msra.mxu0 %v203
  %362 = vmatprep.subr.mxu0 %v208
  %363 = vmatpush1.msra.mxu0 %v207
  %364 = vmatprep.subr.mxu0 %v212
  %365 = vmatpush1.msra.mxu0 %v211
  %366 = vmatprep.subr.mxu0 %v216
  %367 = vmatpush1.msra.mxu0 %v215
  %368 = vmatprep.subr.mxu0 %v220
  %369 = vmatpush1.msra.mxu0 %v219
  %370 = vmatprep.subr.mxu0 %v224
  %371 = vmatpush1.msra.mxu0 %v223
  %372 = vmatprep.subr.mxu0 0.0
  %373 = vmatpush1.msra.mxu0 0.0
  %374 = vmatprep.subr.mxu0 0.0
  %375 = vmatpush1.msra.mxu0 0.0
  %376 = vmatprep.subr.mxu0 0.0
  %377 = vmatpush1.msra.mxu0 0.0
  %378 = vmatprep.subr.mxu0 0.0
  %379 = vmatpush1.msra.mxu0 0.0
  %380 = vmatprep.subr.mxu0 0.0
  %381 = vmatpush1.msra.mxu0 0.0
  %382 = vmatprep.subr.mxu0 0.0
  %383 = vmatpush1.msra.mxu0 0.0
  %384 = vmatprep.subr.mxu0 0.0
  %385 = vmatpush1.msra.mxu0 0.0
  %386 = vmatprep.subr.mxu0 0.0
  %387 = vmatpush1.msra.mxu0 0.0
  %388 = vmatprep.subr.mxu0 0.0
  %389 = vmatpush1.msra.mxu0 0.0
  %390 = vmatprep.subr.mxu0 0.0
  %391 = vmatpush1.msra.mxu0 0.0
  %392 = vmatprep.subr.mxu0 0.0
  %393 = vmatpush1.msra.mxu0 0.0
  %394 = vmatprep.subr.mxu0 0.0
  %395 = vmatpush1.msra.mxu0 0.0
  %396 = vmatprep.subr.mxu0 0.0
  %397 = vmatpush1.msra.mxu0 0.0
  %398 = vmatprep.subr.mxu0 0.0
  %399 = vmatpush1.msra.mxu0 0.0
  %400 = vmatprep.subr.mxu0 0.0
  %401 = vmatpush1.msra.mxu0 0.0
  %402 = vmatprep.subr.mxu0 0.0
  %403 = vmatpush1.msra.mxu0 0.0
  %404 = vmatprep.mubr.f32.mxu0 0.0
  %405 = vmatmul.mubr.f32.gmra.mrb[0].mxu0 %v13
  %v406 = vpop.f32.mrb[0].mxu0
  %v407 = vadd.f32 %v294, %v406
  %v408 = vpop.f32.mrb[0].mxu0
  %v409 = vadd.f32 %v296, %v408
  %410 = vmatprep.mubr.f32.mxu0 0.0
  %411 = vmatmul.mubr.f32.gmra.mrb[0].mxu0 %v16
  %v412 = vpop.f32.mrb[0].mxu0
  %v413 = vadd.f32 %v300, %v412
  %v414 = vpop.f32.mrb[0].mxu0
  %v415 = vadd.f32 %v302, %v414
  %416 = vmatprep.mubr.f32.mxu0 0.0
  %417 = vmatmul.mubr.f32.gmra.mrb[0].mxu0 %v19
  %v418 = vpop.f32.mrb[0].mxu0
  %v419 = vadd.f32 %v306, %v418
  %v420 = vpop.f32.mrb[0].mxu0
  %v421 = vadd.f32 %v308, %v420
  %422 = vmatprep.mubr.f32.mxu0 0.0
  %423 = vmatmul.mubr.f32.gmra.mrb[0].mxu0 %v22
  %v424 = vpop.f32.mrb[0].mxu0
  %v425 = vadd.f32 %v312, %v424
  %v426 = vpop.f32.mrb[0].mxu0
  %v427 = vadd.f32 %v314, %v426
  %428 = vmatprep.mubr.f32.mxu0 0.0
  %429 = vmatmul.mubr.f32.gmra.mrb[0].mxu0 %v25
  %v430 = vpop.f32.mrb[0].mxu0
  %v431 = vadd.f32 %v318, %v430
  %v432 = vpop.f32.mrb[0].mxu0
  %v433 = vadd.f32 %v320, %v432
  %434 = vmatprep.mubr.f32.mxu0 0.0
  %435 = vmatmul.mubr.f32.gmra.mrb[0].mxu0 %v28
  %v436 = vpop.f32.mrb[0].mxu0
  %v437 = vadd.f32 %v324, %v436
  %v438 = vpop.f32.mrb[0].mxu0
  %v439 = vadd.f32 %v326, %v438
  %440 = vmatprep.mubr.f32.mxu0 0.0
  %441 = vmatmul.mubr.f32.gmra.mrb[0].mxu0 %v31
  %v442 = vpop.f32.mrb[0].mxu0
  %v443 = vadd.f32 %v330, %v442
  %v444 = vpop.f32.mrb[0].mxu0
  %v445 = vadd.f32 %v332, %v444
  %446 = vmatprep.mubr.f32.mxu0 0.0
  %447 = vmatmul.mubr.f32.gmra.mrb[0].mxu0 %v34
  %v448 = vpop.f32.mrb[0].mxu0
  %v449 = vadd.f32 %v336, %v448
  %v450 = vpop.f32.mrb[0].mxu0
  %v451 = vadd.f32 %v338, %v450
  %452 = vdwg.mxu0
  %453 = vmatprep.subr.mxu0 %v38
  %454 = vmatpush1.msra.mxu0 %v37
  %455 = vmatprep.subr.mxu0 %v42
  %456 = vmatpush1.msra.mxu0 %v41
  %457 = vmatprep.subr.mxu0 %v46
  %458 = vmatpush1.msra.mxu0 %v45
  %459 = vmatprep.subr.mxu0 %v50
  %460 = vmatpush1.msra.mxu0 %v49
  %461 = vmatprep.subr.mxu0 %v54
  %462 = vmatpush1.msra.mxu0 %v53
  %463 = vmatprep.subr.mxu0 %v58
  %464 = vmatpush1.msra.mxu0 %v57
  %465 = vmatprep.subr.mxu0 %v62
  %466 = vmatpush1.msra.mxu0 %v61
  %467 = vmatprep.subr.mxu0 %v66
  %468 = vmatpush1.msra.mxu0 %v65
  %469 = vmatprep.subr.mxu0 %v70
  %470 = vmatpush1.msra.mxu0 %v69
  %471 = vmatprep.subr.mxu0 %v74
  %472 = vmatpush1.msra.mxu0 %v73
  %473 = vmatprep.subr.mxu0 %v78
  %474 = vmatpush1.msra.mxu0 %v77
  %475 = vmatprep.subr.mxu0 %v82
  %476 = vmatpush1.msra.mxu0 %v81
  %477 = vmatprep.subr.mxu0 %v86
  %478 = vmatpush1.msra.mxu0 %v85
  %479 = vmatprep.subr.mxu0 %v90
  %480 = vmatpush1.msra.mxu0 %v89
  %481 = vmatprep.subr.mxu0 %v94
  %482 = vmatpush1.msra.mxu0 %v93
  %483 = vmatprep.subr.mxu0 %v98
  %484 = vmatpush1.msra.mxu0 %v97
  %485 = vmatprep.subr.mxu0 %v102
  %486 = vmatpush1.msra.mxu0 %v101
  %487 = vmatprep.subr.mxu0 %v106
  %488 = vmatpush1.msra.mxu0 %v105
  %489 = vmatprep.subr.mxu0 %v110
  %490 = vmatpush1.msra.mxu0 %v109
  %491 = vmatprep.subr.mxu0 %v114
  %492 = vmatpush1.msra.mxu0 %v113
  %493 = vmatprep.subr.mxu0 %v118
  %494 = vmatpush1.msra.mxu0 %v117
  %495 = vmatprep.subr.mxu0 %v122
  %496 = vmatpush1.msra.mxu0 %v121
  %497 = vmatprep.subr.mxu0 %v126
  %498 = vmatpush1.msra.mxu0 %v125
  %499 = vmatprep.subr.mxu0 %v130
  %500 = vmatpush1.msra.mxu0 %v129
  %501 = vmatprep.subr.mxu0 %v134
  %502 = vmatpush1.msra.mxu0 %v133
  %503 = vmatprep.subr.mxu0 %v138
  %504 = vmatpush1.msra.mxu0 %v137
  %505 = vmatprep.subr.mxu0 %v142
  %506 = vmatpush1.msra.mxu0 %v141
  %507 = vmatprep.subr.mxu0 %v146
  %508 = vmatpush1.msra.mxu0 %v145
  %509 = vmatprep.subr.mxu0 %v150
  %510 = vmatpush1.msra.mxu0 %v149
  %511 = vmatprep.subr.mxu0 %v154
  %512 = vmatpush1.msra.mxu0 %v153
  %513 = vmatprep.subr.mxu0 %v158
  %514 = vmatpush1.msra.mxu0 %v157
  %515 = vmatprep.subr.mxu0 %v162
  %516 = vmatpush1.msra.mxu0 %v161
  %517 = vmatprep.mubr.f32.mxu0 %v12
  %518 = vmatmul.mubr.f32.gmra.mrb[0].mxu0 %v11
  %v519 = vpop.f32.mrb[0].mxu0
  %v520 = vadd.f32 0.0, %v519
  %v521 = vpop.f32.mrb[0].mxu0
  %v522 = vadd.f32 0.0, %v521
  %523 = vmatprep.mubr.f32.mxu0 %v15
  %524 = vmatmul.mubr.f32.gmra.mrb[0].mxu0 %v14
  %v525 = vpop.f32.mrb[0].mxu0
  %v526 = vadd.f32 0.0, %v525
  %v527 = vpop.f32.mrb[0].mxu0
  %v528 = vadd.f32 0.0, %v527
  %529 = vmatprep.mubr.f32.mxu0 %v18
  %530 = vmatmul.mubr.f32.gmra.mrb[0].mxu0 %v17
  %v531 = vpop.f32.mrb[0].mxu0
  %v532 = vadd.f32 0.0, %v531
  %v533 = vpop.f32.mrb[0].mxu0
  %v534 = vadd.f32 0.0, %v533
  %535 = vmatprep.mubr.f32.mxu0 %v21
  %536 = vmatmul.mubr.f32.gmra.mrb[0].mxu0 %v20
  %v537 = vpop.f32.mrb[0].mxu0
  %v538 = vadd.f32 0.0, %v537
  %v539 = vpop.f32.mrb[0].mxu0
  %v540 = vadd.f32 0.0, %v539
  %541 = vmatprep.mubr.f32.mxu0 %v24
  %542 = vmatmul.mubr.f32.gmra.mrb[0].mxu0 %v23
  %v543 = vpop.f32.mrb[0].mxu0
  %v544 = vadd.f32 0.0, %v543
  %v545 = vpop.f32.mrb[0].mxu0
  %v546 = vadd.f32 0.0, %v545
  %547 = vmatprep.mubr.f32.mxu0 %v27
  %548 = vmatmul.mubr.f32.gmra.mrb[0].mxu0 %v26
  %v549 = vpop.f32.mrb[0].mxu0
  %v550 = vadd.f32 0.0, %v549
  %v551 = vpop.f32.mrb[0].mxu0
  %v552 = vadd.f32 0.0, %v551
  %553 = vmatprep.mubr.f32.mxu0 %v30
  %554 = vmatmul.mubr.f32.gmra.mrb[0].mxu0 %v29
  %v555 = vpop.f32.mrb[0].mxu0
  %v556 = vadd.f32 0.0, %v555
  %v557 = vpop.f32.mrb[0].mxu0
  %v558 = vadd.f32 0.0, %v557
  %559 = vmatprep.mubr.f32.mxu0 %v33
  %560 = vmatmul.mubr.f32.gmra.mrb[0].mxu0 %v32
  %v561 = vpop.f32.mrb[0].mxu0
  %v562 = vadd.f32 0.0, %v561
  %v563 = vpop.f32.mrb[0].mxu0
  %v564 = vadd.f32 0.0, %v563
  %565 = vdwg.mxu0
  %566 = vmatprep.subr.mxu0 %v166
  %567 = vmatpush1.msra.mxu0 %v165
  %568 = vmatprep.subr.mxu0 %v170
  %569 = vmatpush1.msra.mxu0 %v169
  %570 = vmatprep.subr.mxu0 %v174
  %571 = vmatpush1.msra.mxu0 %v173
  %572 = vmatprep.subr.mxu0 %v178
  %573 = vmatpush1.msra.mxu0 %v177
  %574 = vmatprep.subr.mxu0 %v182
  %575 = vmatpush1.msra.mxu0 %v181
  %576 = vmatprep.subr.mxu0 %v186
  %577 = vmatpush1.msra.mxu0 %v185
  %578 = vmatprep.subr.mxu0 %v190
  %579 = vmatpush1.msra.mxu0 %v189
  %580 = vmatprep.subr.mxu0 %v194
  %581 = vmatpush1.msra.mxu0 %v193
  %582 = vmatprep.subr.mxu0 %v198
  %583 = vmatpush1.msra.mxu0 %v197
  %584 = vmatprep.subr.mxu0 %v202
  %585 = vmatpush1.msra.mxu0 %v201
  %586 = vmatprep.subr.mxu0 %v206
  %587 = vmatpush1.msra.mxu0 %v205
  %588 = vmatprep.subr.mxu0 %v210
  %589 = vmatpush1.msra.mxu0 %v209
  %590 = vmatprep.subr.mxu0 %v214
  %591 = vmatpush1.msra.mxu0 %v213
  %592 = vmatprep.subr.mxu0 %v218
  %593 = vmatpush1.msra.mxu0 %v217
  %594 = vmatprep.subr.mxu0 %v222
  %595 = vmatpush1.msra.mxu0 %v221
  %596 = vmatprep.subr.mxu0 %v226
  %597 = vmatpush1.msra.mxu0 %v225
  %598 = vmatprep.subr.mxu0 0.0
  %599 = vmatpush1.msra.mxu0 0.0
  %600 = vmatprep.subr.mxu0 0.0
  %601 = vmatpush1.msra.mxu0 0.0
  %602 = vmatprep.subr.mxu0 0.0
  %603 = vmatpush1.msra.mxu0 0.0
  %604 = vmatprep.subr.mxu0 0.0
  %605 = vmatpush1.msra.mxu0 0.0
  %606 = vmatprep.subr.mxu0 0.0
  %607 = vmatpush1.msra.mxu0 0.0
  %608 = vmatprep.subr.mxu0 0.0
  %609 = vmatpush1.msra.mxu0 0.0
  %610 = vmatprep.subr.mxu0 0.0
  %611 = vmatpush1.msra.mxu0 0.0
  %612 = vmatprep.subr.mxu0 0.0
  %613 = vmatpush1.msra.mxu0 0.0
  %614 = vmatprep.subr.mxu0 0.0
  %615 = vmatpush1.msra.mxu0 0.0
  %616 = vmatprep.subr.mxu0 0.0
  %617 = vmatpush1.msra.mxu0 0.0
  %618 = vmatprep.subr.mxu0 0.0
  %619 = vmatpush1.msra.mxu0 0.0
  %620 = vmatprep.subr.mxu0 0.0
  %621 = vmatpush1.msra.mxu0 0.0
  %622 = vmatprep.subr.mxu0 0.0
  %623 = vmatpush1.msra.mxu0 0.0
  %624 = vmatprep.subr.mxu0 0.0
  %625 = vmatpush1.msra.mxu0 0.0
  %626 = vmatprep.subr.mxu0 0.0
  %627 = vmatpush1.msra.mxu0 0.0
  %628 = vmatprep.subr.mxu0 0.0
  %629 = vmatpush1.msra.mxu0 0.0
  %630 = vmatprep.mubr.f32.mxu0 0.0
  %631 = vmatmul.mubr.f32.gmra.mrb[0].mxu0 %v13
  %v632 = vpop.f32.mrb[0].mxu0
  %v633 = vadd.f32 %v520, %v632
  %v634 = vpop.f32.mrb[0].mxu0
  %v635 = vadd.f32 %v522, %v634
  %636 = vmatprep.mubr.f32.mxu0 0.0
  %637 = vmatmul.mubr.f32.gmra.mrb[0].mxu0 %v16
  %v638 = vpop.f32.mrb[0].mxu0
  %v639 = vadd.f32 %v526, %v638
  %v640 = vpop.f32.mrb[0].mxu0
  %v641 = vadd.f32 %v528, %v640
  %642 = vmatprep.mubr.f32.mxu0 0.0
  %643 = vmatmul.mubr.f32.gmra.mrb[0].mxu0 %v19
  %v644 = vpop.f32.mrb[0].mxu0
  %v645 = vadd.f32 %v532, %v644
  %v646 = vpop.f32.mrb[0].mxu0
  %v647 = vadd.f32 %v534, %v646
  %648 = vmatprep.mubr.f32.mxu0 0.0
  %649 = vmatmul.mubr.f32.gmra.mrb[0].mxu0 %v22
  %v650 = vpop.f32.mrb[0].mxu0
  %v651 = vadd.f32 %v538, %v650
  %v652 = vpop.f32.mrb[0].mxu0
  %v653 = vadd.f32 %v540, %v652
  %654 = vmatprep.mubr.f32.mxu0 0.0
  %655 = vmatmul.mubr.f32.gmra.mrb[0].mxu0 %v25
  %v656 = vpop.f32.mrb[0].mxu0
  %v657 = vadd.f32 %v544, %v656
  %v658 = vpop.f32.mrb[0].mxu0
  %v659 = vadd.f32 %v546, %v658
  %660 = vmatprep.mubr.f32.mxu0 0.0
  %661 = vmatmul.mubr.f32.gmra.mrb[0].mxu0 %v28
  %v662 = vpop.f32.mrb[0].mxu0
  %v663 = vadd.f32 %v550, %v662
  %v664 = vpop.f32.mrb[0].mxu0
  %v665 = vadd.f32 %v552, %v664
  %666 = vmatprep.mubr.f32.mxu0 0.0
  %667 = vmatmul.mubr.f32.gmra.mrb[0].mxu0 %v31
  %v668 = vpop.f32.mrb[0].mxu0
  %v669 = vadd.f32 %v556, %v668
  %v670 = vpop.f32.mrb[0].mxu0
  %v671 = vadd.f32 %v558, %v670
  %672 = vmatprep.mubr.f32.mxu0 0.0
  %673 = vmatmul.mubr.f32.gmra.mrb[0].mxu0 %v34
  %v674 = vpop.f32.mrb[0].mxu0
  %v675 = vadd.f32 %v562, %v674
  %v676 = vpop.f32.mrb[0].mxu0
  %v677 = vadd.f32 %v564, %v676
  %678 = vdwg.mxu0
  %679 = vst [vmem:[%s2] sm:$0xff] %v407
  %680 = vst [vmem:[%s2 + $0x8] sm:$0xff] %v409
  %681 = vst [vmem:[%s2 + $0x10] sm:$0xff] %v633
  %682 = vst [vmem:[%s2 + $0x18] sm:$0xff] %v635
  %683 = vst [vmem:[%s2 + $0x20] sm:$0xff] %v413
  %684 = vst [vmem:[%s2 + $0x28] sm:$0xff] %v415
  %685 = vst [vmem:[%s2 + $0x30] sm:$0xff] %v639
  %686 = vst [vmem:[%s2 + $0x38] sm:$0xff] %v641
  %687 = vst [vmem:[%s2 + $0x40] sm:$0xff] %v419
  %688 = vst [vmem:[%s2 + $0x48] sm:$0xff] %v421
  %689 = vst [vmem:[%s2 + $0x50] sm:$0xff] %v645
  %690 = vst [vmem:[%s2 + $0x58] sm:$0xff] %v647
  %691 = vst [vmem:[%s2 + $0x60] sm:$0xff] %v425
  %692 = vst [vmem:[%s2 + $0x68] sm:$0xff] %v427
  %693 = vst [vmem:[%s2 + $0x70] sm:$0xff] %v651
  %694 = vst [vmem:[%s2 + $0x78] sm:$0xff] %v653
  %695 = vst [vmem:[%s2 + $0x80] sm:$0xff] %v431
  %696 = vst [vmem:[%s2 + $0x88] sm:$0xff] %v433
  %697 = vst [vmem:[%s2 + $0x90] sm:$0xff] %v657
  %698 = vst [vmem:[%s2 + $0x98] sm:$0xff] %v659
  %699 = vst [vmem:[%s2 + $0xa0] sm:$0xff] %v437
  %700 = vst [vmem:[%s2 + $0xa8] sm:$0xff] %v439
  %701 = vst [vmem:[%s2 + $0xb0] sm:$0xff] %v663
  %702 = vst [vmem:[%s2 + $0xb8] sm:$0xff] %v665
  %703 = vst [vmem:[%s2 + $0xc0] sm:$0xff] %v443
  %704 = vst [vmem:[%s2 + $0xc8] sm:$0xff] %v445
  %705 = vst [vmem:[%s2 + $0xd0] sm:$0xff] %v669
  %706 = vst [vmem:[%s2 + $0xd8] sm:$0xff] %v671
  %707 = vst [vmem:[%s2 + $0xe0] sm:$0xff] %v449
  %708 = vst [vmem:[%s2 + $0xe8] sm:$0xff] %v451
  %709 = vst [vmem:[%s2 + $0xf0] sm:$0xff] %v675
  %710 = vst [vmem:[%s2 + $0xf8] sm:$0xff] %v677
  // Predicated region
  $region10: #{tf_loudness_ratio.2} parent=0 // pred_check
    _
  $region11: #{tf_loudness_ratio.2} parent=0 // pred_check_branch
    %712 = sbr.rel (0) target = $region13
  $region12: #{tf_loudness_ratio.2} parent=0 // pred_region
    _
  $region13: #{tf_loudness_ratio.2} parent=0 // pred_fallthru
    _
  // Predicated region
  $region14: #{tf_loudness_ratio.2} parent=0 // pred_check
    _
  $region15: #{tf_loudness_ratio.2} parent=0 // pred_check_branch
    %714 = sbr.rel (0) target = $region17
  $region16: #{tf_loudness_ratio.2} parent=0 // pred_region
    _
  $region17: #{tf_loudness_ratio.2} parent=0 // pred_fallthru
    _

// kernel: tf_loudness_ratio.3
$region0: #{tf_loudness_ratio.3}
  #allocation0 [shape = 'u32[]', space=smem, size = 0x4, offset = 0x4, fixed_abs, tag = 'smem constant byte address 0x4 - core index']
  #allocation1 [shape = 'u32[144,128]{1,0:T(1,128)}', space=vmem, size = 0x12000, scoped, tag = 'internal scratch']
  %s0 = inlined_call_operand.vmem [shape: f32[2000,8,128], index: 0, kind: input, shape index: {}]
  %s1 = inlined_call_operand.vmem [shape: f32[2,8,128], index: 1, kind: output, shape index: {}]
  %s2 = sld [smem:[#allocation0]]
  $region21: #{tf_loudness_ratio.3} parent=0
    _
  %s4 = ssub.s32 1, %s2
  %s5 = scalar_select 0, %s4, %s2
  // Predicated region
  $region2: #{tf_loudness_ratio.3} parent=0 // pred_check
    _
  $region3: #{tf_loudness_ratio.3} parent=0 // pred_check_branch
    %7 = sbr.rel (0) target = $region5
  $region4: #{tf_loudness_ratio.3} parent=0 // pred_region
    _
  $region5: #{tf_loudness_ratio.3} parent=0 // pred_fallthru
    _
  loop: start=0, step=1, limit=250
  $region6: #{tf_loudness_ratio.3} parent=0 // loop_pre_header
    _
  $region7: #{tf_loudness_ratio.3} parent=0 // loop_header
    %s9 = sphi 0, %s13
    %p10 = scmp.ge.s32.totalorder %s9, 250
    %v14 = vphi 0.0, %v34
    %v15 = vphi 0.0, %v33
    %v16 = vphi 0.0, %v205
    %v17 = vphi 0.0, %v182
    %v18 = vphi 0.0, %v207
    %v19 = vphi 0.0, %v184
    %v20 = vphi 0.0, %v215
    %v21 = vphi 0.0, %v192
    %v22 = vphi 0.0, %v228
    %v23 = vphi 0.0, %v237
  $region8: #{tf_loudness_ratio.3} parent=0 // loop_header_branch
    %12 = sbr.rel (%p10) target = $region12
  $region9: #{tf_loudness_ratio.3} parent=0 // loop_body
    %s24 = smul.u32 %s9, 8
    %s25 = smul.u32 %s24, 8
    %s26 = scalar_lea.vmem %s0, %s25
    %v27 = vld [vmem:[%s26] sm:$0xff]
    %v28 = vld [vmem:[%s26 + $0x8] sm:$0xff]
    %v29 = vld [vmem:[%s26 + $0x10] sm:$0xff]
    %v30 = vld [vmem:[%s26 + $0x18] sm:$0xff]
    %v31 = vld [vmem:[%s26 + $0x20] sm:$0xff]
    %v32 = vld [vmem:[%s26 + $0x28] sm:$0xff]
    %v33 = vld [vmem:[%s26 + $0x30] sm:$0xff]
    %v34 = vld [vmem:[%s26 + $0x38] sm:$0xff]
    %v35 = vmul.f32 %v27, 1.1295809
    %v36 = vmul.f32 %v14, 0.945511
    %v37 = vadd.f32 %v35, %v36
    %v38 = vmul.f32 %v15, 0.33691818
    %v39 = vadd.f32 %v37, %v38
    %v40 = vmul.f32 %v16, 1.0416445
    %v41 = vsub.f32 %v39, %v40
    %v42 = vmul.f32 %v17, 0.37036562
    %v43 = vsub.f32 %v41, %v42
    %v44 = vmax.f32 %v43, -1.0
    %v45 = vmin.f32 %v44, 1.0
    %v46 = vmul.f32 %v45, 0.9428632
    %v47 = vmul.f32 %v18, -1.8857265
    %v48 = vadd.f32 %v46, %v47
    %v49 = vmul.f32 %v19, 0.9428632
    %v50 = vadd.f32 %v48, %v49
    %v51 = vmul.f32 %v20, -1.8840457
    %v52 = vsub.f32 %v50, %v51
    %v53 = vmul.f32 %v21, 0.88740706
    %v54 = vsub.f32 %v52, %v53
    %v55 = vmax.f32 %v54, -1.0
    %v56 = vmin.f32 %v55, 1.0
    %v57 = vmul.f32 %v56, %v56
    %v58 = vmul.f32 %v28, 1.1295809
    %v59 = vmul.f32 %v27, 0.945511
    %v60 = vadd.f32 %v58, %v59
    %v61 = vmul.f32 %v14, 0.33691818
    %v62 = vadd.f32 %v60, %v61
    %v63 = vmul.f32 %v43, 1.0416445
    %v64 = vsub.f32 %v62, %v63
    %v65 = vmul.f32 %v16, 0.37036562
    %v66 = vsub.f32 %v64, %v65
    %v67 = vmax.f32 %v66, -1.0
    %v68 = vmin.f32 %v67, 1.0
    %v69 = vmul.f32 %v68, 0.9428632
    %v70 = vmul.f32 %v45, -1.8857265
    %v71 = vadd.f32 %v69, %v70
    %v72 = vmul.f32 %v18, 0.9428632
    %v73 = vadd.f32 %v71, %v72
    %v74 = vmul.f32 %v54, -1.8840457
    %v75 = vsub.f32 %v73, %v74
    %v76 = vmul.f32 %v20, 0.88740706
    %v77 = vsub.f32 %v75, %v76
    %v78 = vmax.f32 %v77, -1.0
    %v79 = vmin.f32 %v78, 1.0
    %v80 = vmul.f32 %v79, %v79
    %v81 = vadd.f32 %v57, %v80
    %v82 = vmul.f32 %v29, 1.1295809
    %v83 = vmul.f32 %v28, 0.945511
    %v84 = vadd.f32 %v82, %v83
    %v85 = vmul.f32 %v27, 0.33691818
    %v86 = vadd.f32 %v84, %v85
    %v87 = vmul.f32 %v66, 1.0416445
    %v88 = vsub.f32 %v86, %v87
    %v89 = vmul.f32 %v43, 0.37036562
    %v90 = vsub.f32 %v88, %v89
    %v91 = vmax.f32 %v90, -1.0
    %v92 = vmin.f32 %v91, 1.0
    %v93 = vmul.f32 %v92, 0.9428632
    %v94 = vmul.f32 %v68, -1.8857265
    %v95 = vadd.f32 %v93, %v94
    %v96 = vadd.f32 %v95, %v46
    %v97 = vmul.f32 %v77, -1.8840457
    %v98 = vsub.f32 %v96, %v97
    %v99 = vmul.f32 %v54, 0.88740706
    %v100 = vsub.f32 %v98, %v99
    %v101 = vmax.f32 %v100, -1.0
    %v102 = vmin.f32 %v101, 1.0
    %v103 = vmul.f32 %v102, %v102
    %v104 = vadd.f32 %v81, %v103
    %v105 = vmul.f32 %v30, 1.1295809
    %v106 = vmul.f32 %v29, 0.945511
    %v107 = vadd.f32 %v105, %v106
    %v108 = vmul.f32 %v28, 0.33691818
    %v109 = vadd.f32 %v107, %v108
    %v110 = vmul.f32 %v90, 1.0416445
    %v111 = vsub.f32 %v109, %v110
    %v112 = vmul.f32 %v66, 0.37036562
    %v113 = vsub.f32 %v111, %v112
    %v114 = vmax.f32 %v113, -1.0
    %v115 = vmin.f32 %v114, 1.0
    %v116 = vmul.f32 %v115, 0.9428632
    %v117 = vmul.f32 %v92, -1.8857265
    %v118 = vadd.f32 %v116, %v117
    %v119 = vadd.f32 %v118, %v69
    %v120 = vmul.f32 %v100, -1.8840457
    %v121 = vsub.f32 %v119, %v120
    %v122 = vmul.f32 %v77, 0.88740706
    %v123 = vsub.f32 %v121, %v122
    %v124 = vmax.f32 %v123, -1.0
    %v125 = vmin.f32 %v124, 1.0
    %v126 = vmul.f32 %v125, %v125
    %v127 = vadd.f32 %v104, %v126
    %v128 = vmul.f32 %v31, 1.1295809
    %v129 = vmul.f32 %v30, 0.945511
    %v130 = vadd.f32 %v128, %v129
    %v131 = vmul.f32 %v29, 0.33691818
    %v132 = vadd.f32 %v130, %v131
    %v133 = vmul.f32 %v113, 1.0416445
    %v134 = vsub.f32 %v132, %v133
    %v135 = vmul.f32 %v90, 0.37036562
    %v136 = vsub.f32 %v134, %v135
    %v137 = vmax.f32 %v136, -1.0
    %v138 = vmin.f32 %v137, 1.0
    %v139 = vmul.f32 %v138, 0.9428632
    %v140 = vmul.f32 %v115, -1.8857265
    %v141 = vadd.f32 %v139, %v140
    %v142 = vadd.f32 %v141, %v93
    %v143 = vmul.f32 %v123, -1.8840457
    %v144 = vsub.f32 %v142, %v143
    %v145 = vmul.f32 %v100, 0.88740706
    %v146 = vsub.f32 %v144, %v145
    %v147 = vmax.f32 %v146, -1.0
    %v148 = vmin.f32 %v147, 1.0
    %v149 = vmul.f32 %v148, %v148
    %v150 = vadd.f32 %v127, %v149
    %v151 = vmul.f32 %v32, 1.1295809
    %v152 = vmul.f32 %v31, 0.945511
    %v153 = vadd.f32 %v151, %v152
    %v154 = vmul.f32 %v30, 0.33691818
    %v155 = vadd.f32 %v153, %v154
    %v156 = vmul.f32 %v136, 1.0416445
    %v157 = vsub.f32 %v155, %v156
    %v158 = vmul.f32 %v113, 0.37036562
    %v159 = vsub.f32 %v157, %v158
    %v160 = vmax.f32 %v159, -1.0
    %v161 = vmin.f32 %v160, 1.0
    %v162 = vmul.f32 %v161, 0.9428632
    %v163 = vmul.f32 %v138, -1.8857265
    %v164 = vadd.f32 %v162, %v163
    %v165 = vadd.f32 %v164, %v116
    %v166 = vmul.f32 %v146, -1.8840457
    %v167 = vsub.f32 %v165, %v166
    %v168 = vmul.f32 %v123, 0.88740706
    %v169 = vsub.f32 %v167, %v168
    %v170 = vmax.f32 %v169, -1.0
    %v171 = vmin.f32 %v170, 1.0
    %v172 = vmul.f32 %v171, %v171
    %v173 = vadd.f32 %v150, %v172
    %v174 = vmul.f32 %v33, 1.1295809
    %v175 = vmul.f32 %v32, 0.945511
    %v176 = vadd.f32 %v174, %v175
    %v177 = vmul.f32 %v31, 0.33691818
    %v178 = vadd.f32 %v176, %v177
    %v179 = vmul.f32 %v159, 1.0416445
    %v180 = vsub.f32 %v178, %v179
    %v181 = vmul.f32 %v136, 0.37036562
    %v182 = vsub.f32 %v180, %v181
    %v183 = vmax.f32 %v182, -1.0
    %v184 = vmin.f32 %v183, 1.0
    %v185 = vmul.f32 %v184, 0.9428632
    %v186 = vmul.f32 %v161, -1.8857265
    %v187 = vadd.f32 %v185, %v186
    %v188 = vadd.f32 %v187, %v139
    %v189 = vmul.f32 %v169, -1.8840457
    %v190 = vsub.f32 %v188, %v189
    %v191 = vmul.f32 %v146, 0.88740706
    %v192 = vsub.f32 %v190, %v191
    %v193 = vmax.f32 %v192, -1.0
    %v194 = vmin.f32 %v193, 1.0
    %v195 = vmul.f32 %v194, %v194
    %v196 = vadd.f32 %v173, %v195
    %v197 = vmul.f32 %v34, 1.1295809
    %v198 = vmul.f32 %v33, 0.945511
    %v199 = vadd.f32 %v197, %v198
    %v200 = vmul.f32 %v32, 0.33691818
    %v201 = vadd.f32 %v199, %v200
    %v202 = vmul.f32 %v182, 1.0416445
    %v203 = vsub.f32 %v201, %v202
    %v204 = vmul.f32 %v159, 0.37036562
    %v205 = vsub.f32 %v203, %v204
    %v206 = vmax.f32 %v205, -1.0
    %v207 = vmin.f32 %v206, 1.0
    %v208 = vmul.f32 %v207, 0.9428632
    %v209 = vmul.f32 %v184, -1.8857265
    %v210 = vadd.f32 %v208, %v209
    %v211 = vadd.f32 %v210, %v162
    %v212 = vmul.f32 %v192, -1.8840457
    %v213 = vsub.f32 %v211, %v212
    %v214 = vmul.f32 %v169, 0.88740706
    %v215 = vsub.f32 %v213, %v214
    %v216 = vmax.f32 %v215, -1.0
    %v217 = vmin.f32 %v216, 1.0
    %v218 = vmul.f32 %v217, %v217
    %v219 = vadd.f32 %v196, %v218
    %p220 = scmp.ge.s32.totalorder %s9, 0
    %p221 = scmp.lt.s32.totalorder %s9, 200
    %p222 = pnand %p220, %p221
    %p223 = pneg %p222
    %s224 = scalar_select %p223, 1, 0
    %v225 = vstv %s224
    %vm226 = vcmp.eq.s32.totalorder %v225, 1
    %v227 = vsel %vm226, %v219, 0.0
    %v228 = vadd.f32 %v22, %v227
    %p229 = scmp.ge.s32.totalorder %s9, 50
    %p230 = scmp.lt.s32.totalorder %s9, 250
    %p231 = pnand %p229, %p230
    %p232 = pneg %p231
    %s233 = scalar_select %p232, 1, 0
    %v234 = vstv %s233
    %vm235 = vcmp.eq.s32.totalorder %v234, 1
    %v236 = vsel %vm235, %v219, 0.0
    %v237 = vadd.f32 %v23, %v236
  $region10: #{tf_loudness_ratio.3} parent=0 // loop_footer
    %s13 = sadd.s32 1, %s9
  $region11: #{tf_loudness_ratio.3} parent=0 // loop_footer_branch
    %8 = sbr.rel target = $region7
  $region12: #{tf_loudness_ratio.3} parent=0 // loop_exit
    _
  %v238 = vmul.f32 %v22, 0.000625
  %v239 = vadd.f32 %v238, 1.1920929e-07
  %v240 = vlog2.pop %v239
  %v241 = vmul.f32 %v240, 0.6931472
  %v242 = vmul.f32 %v241, 4.3429446
  %v243 = vadd.f32 %v242, -0.691
  %244 = vst [vmem:[%s1] sm:$0xff] %v243
  %v245 = vmul.f32 %v23, 0.000625
  %v246 = vadd.f32 %v245, 1.1920929e-07
  %v247 = vlog2.pop %v246
  %v248 = vmul.f32 %v247, 0.6931472
  %v249 = vmul.f32 %v248, 4.3429446
  %v250 = vadd.f32 %v249, -0.691
  %s251 = scalar_lea.vmem %s1, 8
  %252 = vst [vmem:[%s251] sm:$0xff] %v250
  // Predicated region
  $region13: #{tf_loudness_ratio.3} parent=0 // pred_check
    _
  $region14: #{tf_loudness_ratio.3} parent=0 // pred_check_branch
    %254 = sbr.rel (0) target = $region16
  $region15: #{tf_loudness_ratio.3} parent=0 // pred_region
    _
  $region16: #{tf_loudness_ratio.3} parent=0 // pred_fallthru
    _
  // Predicated region
  $region17: #{tf_loudness_ratio.3} parent=0 // pred_check
    _
  $region18: #{tf_loudness_ratio.3} parent=0 // pred_check_branch
    %256 = sbr.rel (0) target = $region20
  $region19: #{tf_loudness_ratio.3} parent=0 // pred_region
    _
  $region20: #{tf_loudness_ratio.3} parent=0 // pred_fallthru
    _

</llo_original>
